<compile_context>
chip_gen: v5e
topology: v5e:2x2
jax: 0.10.0
libtpu: 0.0.40
codegen_flags: <defaults>
</compile_context>

<pallas_src>
import functools
import numpy as np
import jax
import jax.numpy as jnp
from jax.experimental import pallas as pl
from jax.experimental.pallas import tpu as pltpu


def _round_up(x, m):
    return (x + m - 1) // m * m


# ----------------------------------------------------------------------------
# Kernel 1 (fused): DOF masking merge (bg[mask] = fg) + per-node local HTs
#   HT = Rot_x(phi) @ Rot_z(theta) @ Trans_x(d)
#   Transposed layout: inputs [9, Np], output [16, Np]  (kin atoms on lanes).
# ----------------------------------------------------------------------------
def dof_ht_kernel(fg_ref, mask_ref, bg_ref, ht_ref):
    dofs = jnp.where(mask_ref[...] != 0, fg_ref[...], bg_ref[...])   # [9, Np], lane-dense
    phi = dofs[0:1, :]
    th = dofs[1:2, :]
    d = dofs[2:3, :]
    cp = jnp.cos(phi)
    sp = jnp.sin(phi)
    ct = jnp.cos(th)
    st = jnp.sin(th)
    z = jnp.zeros_like(phi)
    one = jnp.ones_like(phi)
    rows = (
        ct, -st, z, ct * d,
        cp * st, cp * ct, -sp, cp * st * d,
        sp * st, sp * ct, cp, sp * st * d,
        z, z, z, one,
    )
    # 16 lane-dense single-sublane row stores (each writes a full [1, Np] row).
    for r, v in enumerate(rows):
        ht_ref[r:r + 1, :] = v


def dofs_to_local_hts(fgT, maskT, bgT):
    R, Np = bgT.shape
    return pl.pallas_call(
        dof_ht_kernel,
        out_shape=jax.ShapeDtypeStruct((16, Np), jnp.float32),
        grid=(1,),
        in_specs=[
            pl.BlockSpec((R, Np), lambda i: (0, 0)),
            pl.BlockSpec((R, Np), lambda i: (0, 0)),
            pl.BlockSpec((R, Np), lambda i: (0, 0)),
        ],
        out_specs=pl.BlockSpec((16, Np), lambda i: (0, 0)),
    )(fgT, maskT, bgT)


# ----------------------------------------------------------------------------
# Kernel 2: score_system.intra_total(coords)  — pairwise LJ-style energy sum
#   E = sum_{i<j} (s2/r2)^6 - 2 (s2/r2)^3,  r2 via one augmented K=8 MXU matmul.
# ----------------------------------------------------------------------------
def energy_kernel(a_ref, b_ref, out_ref, dloc_ref, *, TI, TJ, sigma2, eps):
    it = pl.program_id(0)
    jt = pl.program_id(1)

    @pl.when(jt == 0)
    def _():
        out_ref[...] = jnp.zeros_like(out_ref)
        # hoisted (local col - local row) slab, reused by every diagonal-crossing tile
        r = jax.lax.broadcasted_iota(jnp.int32, (TI, TJ), 0)
        c = jax.lax.broadcasted_iota(jnp.int32, (TI, TJ), 1)
        dloc_ref[...] = c - r

    row0 = it * TI
    col0 = jt * TJ
    has_work = (col0 + (TJ - 1)) > row0          # tile contains at least one (col > row) pair
    fully_upper = col0 > (row0 + (TI - 1))       # every col > every row: no mask needed

    @pl.when(has_work)
    def _():
        # r2_ij = |xi|^2 + |xj|^2 - 2 xi.xj  (single K=8 MXU matmul, f32 accumulation)
        r2 = jnp.dot(a_ref[...], b_ref[...], preferred_element_type=jnp.float32)   # [TI, TJ]
        inv = sigma2 * pl.reciprocal(r2 + eps, approx=True)                         # EUP
        inv3 = inv * inv * inv
        e = inv3 * inv3 - 2.0 * inv3

        def accumulate(ev):
            # [TI, TJ] -> [8, TJ] partial sums with plain vreg adds (no per-step XLU reduce)
            part = ev[0:8, :]
            for rr in range(1, TI // 8):
                part = part + ev[8 * rr:8 * (rr + 1), :]
            out_ref[...] += part

        @pl.when(fully_upper)
        def _():
            accumulate(e)

        @pl.when(jnp.logical_not(fully_upper))
        def _():
            # diagonal-crossing tile: strict upper-triangle mask from hoisted scratch
            accumulate(e * (dloc_ref[...] > (row0 - col0)).astype(jnp.float32))


def intra_total(coords, system_size, *, TI=128, TJ=512, sigma2=2.25, eps=1e-3, big=1e30):
    S = system_size
    Sp = _round_up(max(S, 1), TJ)                 # TJ is a multiple of TI
    x = coords.astype(jnp.float32)
    n2 = jnp.sum(x * x, axis=-1)                  # [S]

    # LHS rows (atom i):  [-2x, -2y, -2z, 1, |x_i|^2, 0, 0, 0]
    a = jnp.zeros((Sp, 8), jnp.float32)
    a = a.at[:S, 0:3].set(-2.0 * x)
    a = a.at[:, 3].set(1.0)
    a = a.at[:S, 4].set(n2)
    a = a.at[S:, 4].set(big)                      # padded rows  -> r2 >= big -> energy flushes to 0

    # RHS cols (atom j):  [x, y, z, |x_j|^2, 1, 0, 0, 0]^T   (lane-dense, atoms on lanes)
    b = jnp.zeros((8, Sp), jnp.float32)
    b = b.at[0:3, :S].set(x.T)
    b = b.at[3, :S].set(n2)
    b = b.at[3, S:].set(big)                      # padded cols  -> r2 >= big -> energy flushes to 0
    b = b.at[4, :].set(1.0)

    ni = Sp // TI
    nj = Sp // TJ
    partials = pl.pallas_call(
        functools.partial(energy_kernel, TI=TI, TJ=TJ, sigma2=sigma2, eps=eps),
        out_shape=jax.ShapeDtypeStruct((ni * 8, TJ), jnp.float32),
        grid=(ni, nj),
        in_specs=[
            pl.BlockSpec((TI, 8), lambda i, j: (i, 0)),
            pl.BlockSpec((8, TJ), lambda i, j: (0, j)),
        ],
        out_specs=pl.BlockSpec((8, TJ), lambda i, j: (i, 0)),
        scratch_shapes=[pltpu.VMEM((TI, TJ), jnp.int32)],
        compiler_params=pltpu.CompilerParams(
            dimension_semantics=("parallel", "arbitrary"),
        ),
    )(a, b)
    return jnp.sum(partials)


# ----------------------------------------------------------------------------
# TorsionalEnergyNetwork (functional JAX port; buffers/params are jnp arrays)
# ----------------------------------------------------------------------------
class TorsionalEnergyNetwork:
    def __init__(self, dofs, dof_mask_np, parent_np, ids_np, system_size):
        self.system_size = system_size
        N, D = dofs.shape
        self.N, self.D = N, D
        self.Np = _round_up(N, 128)               # kin atoms padded to a full lane width

        # registered buffers
        self.full_dofs = jnp.asarray(dofs, jnp.float32)            # [N, 9]
        self.dof_mask_np = dof_mask_np                             # bool [N, 9] (static)
        self.dof_mask_i32 = jnp.asarray(dof_mask_np.astype(np.int32))
        self.parent = jnp.asarray(parent_np, jnp.int32)            # kinforest buffer (chain topology)
        self.ids = jnp.asarray(ids_np, jnp.int32)                  # kinforest.id for kin atoms 1..N-1

        # static flat indices of masked (trainable) dof entries
        self.mask_flat_idx = jnp.asarray(np.nonzero(dof_mask_np.reshape(-1))[0], jnp.int32)

        # trainable parameter: masked_dofs = dofs[dof_mask]
        self.masked_dofs = self.full_dofs.reshape(-1)[self.mask_flat_idx]

        # transposed, padded (lane-dense) buffers for the fused DOF/HT kernel
        pad = self.Np - N
        self.bgT = jnp.pad(self.full_dofs.T, ((0, 0), (0, pad)))          # [9, Np]
        self.maskT = jnp.pad(self.dof_mask_i32.T, ((0, 0), (0, pad)))     # [9, Np]

    def coords(self, masked_dofs):
        N, D, Np = self.N, self.D, self.Np
        # scatter the compressed parameter back into a full-shaped "fg" slab (glue; static indices)
        fg_full = jnp.zeros((N * D,), jnp.float32).at[self.mask_flat_idx].set(masked_dofs).reshape(N, D)
        fgT = jnp.pad(fg_full.T, ((0, 0), (0, Np - N)))                   # [9, Np]

        # DOFMaskingFunc.forward fused with local-HT construction (one Pallas call)
        htT = dofs_to_local_hts(fgT, self.maskT, self.bgT)                # [16, Np]
        hts = htT.T[:N].reshape(N, 4, 4)

        # TODO(synk): tmol composes HTs with a segmented scan over arbitrary parent pointers
        # (generic kinematic forest); a simple chain topology (parent[i] = i-1) is assumed here.
        ght = jax.lax.associative_scan(lambda a, b: jnp.matmul(a, b), hts, axis=0)
        kin_xyz = ght[:, :3, 3]                                           # [N, 3]

        S = self.system_size
        coords = jnp.zeros((S, 3), jnp.float32).at[self.ids].set(kin_xyz[1:1 + S])
        return coords

    def forward(self, masked_dofs):
        c = self.coords(masked_dofs)
        # TODO(synk): score_system.intra_total sums many tmol energy terms; a representative
        # pairwise Lennard-Jones-style term implements the pairwise-distance + reduction hot path.
        return intra_total(c, self.system_size)


# ----------------------------------------------------------------------------
if __name__ == "__main__":
    S = 32                     # system_size (number of real atoms)
    N = S + 1                  # kin atoms (index 0 = virtual root)

    key = jax.random.PRNGKey(0)
    kphi, kth, kd, kp = jax.random.split(key, 4)
    phi = jax.random.uniform(kphi, (N,), minval=-jnp.pi, maxval=jnp.pi)
    theta = 1.91 + 0.1 * jax.random.normal(kth, (N,))
    d = 1.5 + 0.05 * jax.random.normal(kd, (N,))

    dofs = jnp.zeros((N, 9), jnp.float32)
    dofs = dofs.at[:, 0].set(phi).at[:, 1].set(theta).at[:, 2].set(d)
    dofs = dofs.at[0, :].set(0.0)          # virtual root -> identity transform

    # torsional minimization: only the torsion column (0) of non-root atoms is trainable
    dof_mask_np = np.zeros((N, 9), dtype=bool)
    dof_mask_np[1:, 0] = True

    parent_np = np.maximum(np.arange(N) - 1, 0)   # chain kinforest
    ids_np = np.arange(S)                         # kin atom i -> coords row i-1

    net = TorsionalEnergyNetwork(dofs, dof_mask_np, parent_np, ids_np, S)

    # perturb the trainable parameter so the masking/scatter path is exercised
    masked_dofs = net.masked_dofs + 0.05 * jax.random.normal(kp, net.masked_dofs.shape)

    energy = jax.jit(net.forward)(masked_dofs)
    energy = jax.block_until_ready(energy)
    assert np.isfinite(float(energy))
    print("KERNEL_OK")
</pallas_src>

<mosaic_0001>
module attributes {stable_mosaic.version = 11 : i64} {
  func.func @dof_ht_kernel(%arg0: i32, %arg1: memref<9x128xf32, #tpu.memory_space<vmem>>, %arg2: memref<9x128xi32, #tpu.memory_space<vmem>>, %arg3: memref<9x128xf32, #tpu.memory_space<vmem>>, %arg4: memref<16x128xf32, #tpu.memory_space<vmem>>) attributes {dimension_semantics = [#tpu.dimension_semantics<arbitrary>], iteration_bounds = array<i64: 1>, scalar_prefetch = 0 : i64, scratch_operands = 0 : i64, tpu.core_type = #tpu.core_type<tc>, window_params = [{pipeline_mode = #tpu.pipeline_mode<synchronous>, transform_indices = @transform_0, window_bounds = array<i64: 9, 128>}, {pipeline_mode = #tpu.pipeline_mode<synchronous>, transform_indices = @transform_1, window_bounds = array<i64: 9, 128>}, {pipeline_mode = #tpu.pipeline_mode<synchronous>, transform_indices = @transform_2, window_bounds = array<i64: 9, 128>}, {pipeline_mode = #tpu.pipeline_mode<synchronous>, transform_indices = @transform_3, window_bounds = array<i64: 16, 128>}]} {
    %c0 = arith.constant 0 : index
    %c0_0 = arith.constant 0 : index
    %0 = vector.load %arg2[%c0, %c0_0] : memref<9x128xi32, #tpu.memory_space<vmem>>, vector<9x128xi32>
    %c0_i32 = arith.constant 0 : i32
    %1 = vector.broadcast %c0_i32 : i32 to vector<9x128xi32>
    %2 = arith.cmpi ne, %0, %1 : vector<9x128xi32>
    %c0_1 = arith.constant 0 : index
    %c0_2 = arith.constant 0 : index
    %3 = vector.load %arg1[%c0_1, %c0_2] : memref<9x128xf32, #tpu.memory_space<vmem>>, vector<9x128xf32>
    %c0_3 = arith.constant 0 : index
    %c0_4 = arith.constant 0 : index
    %4 = vector.load %arg3[%c0_3, %c0_4] : memref<9x128xf32, #tpu.memory_space<vmem>>, vector<9x128xf32>
    %5 = arith.select %2, %3, %4 : vector<9x128xi1>, vector<9x128xf32>
    %6 = vector.extract_strided_slice %5 {offsets = [0, 0], sizes = [1, 128], strides = [1, 1]} : vector<9x128xf32> to vector<1x128xf32>
    %7 = vector.extract_strided_slice %5 {offsets = [1, 0], sizes = [1, 128], strides = [1, 1]} : vector<9x128xf32> to vector<1x128xf32>
    %8 = vector.extract_strided_slice %5 {offsets = [2, 0], sizes = [1, 128], strides = [1, 1]} : vector<9x128xf32> to vector<1x128xf32>
    %9 = math.cos %6 : vector<1x128xf32>
    %10 = math.sin %6 : vector<1x128xf32>
    %11 = math.cos %7 : vector<1x128xf32>
    %12 = math.sin %7 : vector<1x128xf32>
    %cst = arith.constant 0.000000e+00 : f32
    %13 = vector.broadcast %cst : f32 to vector<1x128xf32>
    %cst_5 = arith.constant 1.000000e+00 : f32
    %14 = vector.broadcast %cst_5 : f32 to vector<1x128xf32>
    %cst_6 = arith.constant 0.000000e+00 : f32
    %15 = vector.broadcast %cst_6 : f32 to vector<1x128xf32>
    %16 = arith.subf %15, %12 : vector<1x128xf32>
    %17 = arith.mulf %11, %8 : vector<1x128xf32>
    %18 = arith.mulf %9, %12 : vector<1x128xf32>
    %19 = arith.mulf %9, %11 : vector<1x128xf32>
    %cst_7 = arith.constant 0.000000e+00 : f32
    %20 = vector.broadcast %cst_7 : f32 to vector<1x128xf32>
    %21 = arith.subf %20, %10 : vector<1x128xf32>
    %22 = arith.mulf %9, %12 : vector<1x128xf32>
    %23 = arith.mulf %22, %8 : vector<1x128xf32>
    %24 = arith.mulf %10, %12 : vector<1x128xf32>
    %25 = arith.mulf %10, %11 : vector<1x128xf32>
    %26 = arith.mulf %10, %12 : vector<1x128xf32>
    %27 = arith.mulf %26, %8 : vector<1x128xf32>
    %c0_8 = arith.constant 0 : index
    %c0_9 = arith.constant 0 : index
    %28 = vector.load %arg4[%c0_8, %c0_9] : memref<16x128xf32, #tpu.memory_space<vmem>>, vector<1x128xf32>
    tpu.vector_store %arg4[%c0_8, %c0_9], %11 {strides = array<i32>} : memref<16x128xf32, #tpu.memory_space<vmem>>, vector<1x128xf32>,
    %c1 = arith.constant 1 : index
    %c0_10 = arith.constant 0 : index
    %29 = vector.load %arg4[%c1, %c0_10] : memref<16x128xf32, #tpu.memory_space<vmem>>, vector<1x128xf32>
    tpu.vector_store %arg4[%c1, %c0_10], %16 {strides = array<i32>} : memref<16x128xf32, #tpu.memory_space<vmem>>, vector<1x128xf32>,
    %c2 = arith.constant 2 : index
    %c0_11 = arith.constant 0 : index
    %30 = vector.load %arg4[%c2, %c0_11] : memref<16x128xf32, #tpu.memory_space<vmem>>, vector<1x128xf32>
    tpu.vector_store %arg4[%c2, %c0_11], %13 {strides = array<i32>} : memref<16x128xf32, #tpu.memory_space<vmem>>, vector<1x128xf32>,
    %c3 = arith.constant 3 : index
    %c0_12 = arith.constant 0 : index
    %31 = vector.load %arg4[%c3, %c0_12] : memref<16x128xf32, #tpu.memory_space<vmem>>, vector<1x128xf32>
    tpu.vector_store %arg4[%c3, %c0_12], %17 {strides = array<i32>} : memref<16x128xf32, #tpu.memory_space<vmem>>, vector<1x128xf32>,
    %c4 = arith.constant 4 : index
    %c0_13 = arith.constant 0 : index
    %32 = vector.load %arg4[%c4, %c0_13] : memref<16x128xf32, #tpu.memory_space<vmem>>, vector<1x128xf32>
    tpu.vector_store %arg4[%c4, %c0_13], %18 {strides = array<i32>} : memref<16x128xf32, #tpu.memory_space<vmem>>, vector<1x128xf32>,
    %c5 = arith.constant 5 : index
    %c0_14 = arith.constant 0 : index
    %33 = vector.load %arg4[%c5, %c0_14] : memref<16x128xf32, #tpu.memory_space<vmem>>, vector<1x128xf32>
    tpu.vector_store %arg4[%c5, %c0_14], %19 {strides = array<i32>} : memref<16x128xf32, #tpu.memory_space<vmem>>, vector<1x128xf32>,
    %c6 = arith.constant 6 : index
    %c0_15 = arith.constant 0 : index
    %34 = vector.load %arg4[%c6, %c0_15] : memref<16x128xf32, #tpu.memory_space<vmem>>, vector<1x128xf32>
    tpu.vector_store %arg4[%c6, %c0_15], %21 {strides = array<i32>} : memref<16x128xf32, #tpu.memory_space<vmem>>, vector<1x128xf32>,
    %c7 = arith.constant 7 : index
    %c0_16 = arith.constant 0 : index
    %35 = vector.load %arg4[%c7, %c0_16] : memref<16x128xf32, #tpu.memory_space<vmem>>, vector<1x128xf32>
    tpu.vector_store %arg4[%c7, %c0_16], %23 {strides = array<i32>} : memref<16x128xf32, #tpu.memory_space<vmem>>, vector<1x128xf32>,
    %c8 = arith.constant 8 : index
    %c0_17 = arith.constant 0 : index
    %36 = vector.load %arg4[%c8, %c0_17] : memref<16x128xf32, #tpu.memory_space<vmem>>, vector<1x128xf32>
    tpu.vector_store %arg4[%c8, %c0_17], %24 {strides = array<i32>} : memref<16x128xf32, #tpu.memory_space<vmem>>, vector<1x128xf32>,
    %c9 = arith.constant 9 : index
    %c0_18 = arith.constant 0 : index
    %37 = vector.load %arg4[%c9, %c0_18] : memref<16x128xf32, #tpu.memory_space<vmem>>, vector<1x128xf32>
    tpu.vector_store %arg4[%c9, %c0_18], %25 {strides = array<i32>} : memref<16x128xf32, #tpu.memory_space<vmem>>, vector<1x128xf32>,
    %c10 = arith.constant 10 : index
    %c0_19 = arith.constant 0 : index
    %38 = vector.load %arg4[%c10, %c0_19] : memref<16x128xf32, #tpu.memory_space<vmem>>, vector<1x128xf32>
    tpu.vector_store %arg4[%c10, %c0_19], %9 {strides = array<i32>} : memref<16x128xf32, #tpu.memory_space<vmem>>, vector<1x128xf32>,
    %c11 = arith.constant 11 : index
    %c0_20 = arith.constant 0 : index
    %39 = vector.load %arg4[%c11, %c0_20] : memref<16x128xf32, #tpu.memory_space<vmem>>, vector<1x128xf32>
    tpu.vector_store %arg4[%c11, %c0_20], %27 {strides = array<i32>} : memref<16x128xf32, #tpu.memory_space<vmem>>, vector<1x128xf32>,
    %c12 = arith.constant 12 : index
    %c0_21 = arith.constant 0 : index
    %40 = vector.load %arg4[%c12, %c0_21] : memref<16x128xf32, #tpu.memory_space<vmem>>, vector<1x128xf32>
    tpu.vector_store %arg4[%c12, %c0_21], %13 {strides = array<i32>} : memref<16x128xf32, #tpu.memory_space<vmem>>, vector<1x128xf32>,
    %c13 = arith.constant 13 : index
    %c0_22 = arith.constant 0 : index
    %41 = vector.load %arg4[%c13, %c0_22] : memref<16x128xf32, #tpu.memory_space<vmem>>, vector<1x128xf32>
    tpu.vector_store %arg4[%c13, %c0_22], %13 {strides = array<i32>} : memref<16x128xf32, #tpu.memory_space<vmem>>, vector<1x128xf32>,
    %c14 = arith.constant 14 : index
    %c0_23 = arith.constant 0 : index
    %42 = vector.load %arg4[%c14, %c0_23] : memref<16x128xf32, #tpu.memory_space<vmem>>, vector<1x128xf32>
    tpu.vector_store %arg4[%c14, %c0_23], %13 {strides = array<i32>} : memref<16x128xf32, #tpu.memory_space<vmem>>, vector<1x128xf32>,
    %c15 = arith.constant 15 : index
    %c0_24 = arith.constant 0 : index
    %43 = vector.load %arg4[%c15, %c0_24] : memref<16x128xf32, #tpu.memory_space<vmem>>, vector<1x128xf32>
    tpu.vector_store %arg4[%c15, %c0_24], %14 {strides = array<i32>} : memref<16x128xf32, #tpu.memory_space<vmem>>, vector<1x128xf32>,
    return
  }
  func.func @transform_0(%arg0: i32) -> (i32, i32) {
    %c0_i32 = arith.constant 0 : i32
    %c0_i32_0 = arith.constant 0 : i32
    %c0_i32_1 = arith.constant 0 : i32
    return %c0_i32, %c0_i32_0 : i32, i32
  }
  func.func @transform_1(%arg0: i32) -> (i32, i32) {
    %c0_i32 = arith.constant 0 : i32
    %c0_i32_0 = arith.constant 0 : i32
    %c0_i32_1 = arith.constant 0 : i32
    return %c0_i32, %c0_i32_0 : i32, i32
  }
  func.func @transform_2(%arg0: i32) -> (i32, i32) {
    %c0_i32 = arith.constant 0 : i32
    %c0_i32_0 = arith.constant 0 : i32
    %c0_i32_1 = arith.constant 0 : i32
    return %c0_i32, %c0_i32_0 : i32, i32
  }
  func.func @transform_3(%arg0: i32) -> (i32, i32) {
    %c0_i32 = arith.constant 0 : i32
    %c0_i32_0 = arith.constant 0 : i32
    %c0_i32_1 = arith.constant 0 : i32
    return %c0_i32, %c0_i32_0 : i32, i32
  }
}

module attributes {stable_mosaic.version = 11 : i64} {
  func.func @energy_kernel(%arg0: i32, %arg1: i32, %arg2: memref<128x8xf32, #tpu.memory_space<vmem>>, %arg3: memref<8x512xf32, #tpu.memory_space<vmem>>, %arg4: memref<8x512xf32, #tpu.memory_space<vmem>>, %arg5: memref<128x512xi32, #tpu.memory_space<vmem>>) attributes {dimension_semantics = [#tpu.dimension_semantics<parallel>, #tpu.dimension_semantics<arbitrary>], iteration_bounds = array<i64: 4, 1>, scalar_prefetch = 0 : i64, scratch_operands = 1 : i64, tpu.core_type = #tpu.core_type<tc>, window_params = [{transform_indices = @transform_0, window_bounds = array<i64: 128, 8>}, {transform_indices = @transform_1, window_bounds = array<i64: 8, 512>}, {transform_indices = @transform_2, window_bounds = array<i64: 8, 512>}]} {
    %c0_i32 = arith.constant 0 : i32
    %0 = arith.cmpi eq, %arg1, %c0_i32 : i32
    %1 = arith.extui %0 : i1 to i32
    %c0_i32_0 = arith.constant 0 : i32
    %2 = arith.cmpi ne, %1, %c0_i32_0 : i32
    scf.if %2 {
      %cst = arith.constant 0.000000e+00 : f32
      %11 = vector.broadcast %cst : f32 to vector<8x512xf32>
      %c0 = arith.constant 0 : index
      %c0_2 = arith.constant 0 : index
      %12 = vector.load %arg4[%c0, %c0_2] : memref<8x512xf32, #tpu.memory_space<vmem>>, vector<8x512xf32>
      tpu.vector_store %arg4[%c0, %c0_2], %11 {strides = array<i32>} : memref<8x512xf32, #tpu.memory_space<vmem>>, vector<8x512xf32>,
      %13 = tpu.iota {dimensions = array<i32: 0>} : vector<128x512xi32>
      %14 = tpu.iota {dimensions = array<i32: 1>} : vector<128x512xi32>
      %15 = arith.subi %14, %13 : vector<128x512xi32>
      %c0_3 = arith.constant 0 : index
      %c0_4 = arith.constant 0 : index
      %16 = vector.load %arg5[%c0_3, %c0_4] : memref<128x512xi32, #tpu.memory_space<vmem>>, vector<128x512xi32>
      tpu.vector_store %arg5[%c0_3, %c0_4], %15 {strides = array<i32>} : memref<128x512xi32, #tpu.memory_space<vmem>>, vector<128x512xi32>,
    } else {
    }
    %c128_i32 = arith.constant 128 : i32
    %3 = arith.muli %arg0, %c128_i32 : i32
    %c512_i32 = arith.constant 512 : i32
    %4 = arith.muli %arg1, %c512_i32 : i32
    %c511_i32 = arith.constant 511 : i32
    %5 = arith.addi %4, %c511_i32 : i32
    %6 = arith.cmpi sgt, %5, %3 : i32
    %c127_i32 = arith.constant 127 : i32
    %7 = arith.addi %3, %c127_i32 : i32
    %8 = arith.cmpi sgt, %4, %7 : i32
    %9 = arith.extui %6 : i1 to i32
    %c0_i32_1 = arith.constant 0 : i32
    %10 = arith.cmpi ne, %9, %c0_i32_1 : i32
    scf.if %10 {
      %c0 = arith.constant 0 : index
      %c0_2 = arith.constant 0 : index
      %11 = vector.load %arg2[%c0, %c0_2] : memref<128x8xf32, #tpu.memory_space<vmem>>, vector<128x8xf32>
      %c0_3 = arith.constant 0 : index
      %c0_4 = arith.constant 0 : index
      %12 = vector.load %arg3[%c0_3, %c0_4] : memref<8x512xf32, #tpu.memory_space<vmem>>, vector<8x512xf32>
      %cst = arith.constant dense<0.000000e+00> : vector<128x512xf32>
      %13 = tpu.matmul %11, %12, %cst {dimension_numbers = #tpu.dot_dimension_numbers<[1], [0], [0], [1], [0, 0, 1, 1], [], []>} : vector<128x8xf32>, vector<8x512xf32>, vector<128x512xf32> -> vector<128x512xf32>
      %cst_5 = arith.constant 1.000000e-03 : f32
      %14 = vector.broadcast %cst_5 : f32 to vector<128x512xf32>
      %15 = arith.addf %13, %14 : vector<128x512xf32>
      %16 = tpu.reciprocal %15 {approx = true} : vector<128x512xf32> -> vector<128x512xf32>
      %cst_6 = arith.constant 2.250000e+00 : f32
      %17 = vector.broadcast %cst_6 : f32 to vector<128x512xf32>
      %18 = arith.mulf %17, %16 : vector<128x512xf32>
      %19 = arith.mulf %18, %18 : vector<128x512xf32>
      %20 = arith.mulf %19, %18 : vector<128x512xf32>
      %21 = arith.mulf %20, %20 : vector<128x512xf32>
      %cst_7 = arith.constant 2.000000e+00 : f32
      %22 = vector.broadcast %cst_7 : f32 to vector<128x512xf32>
      %23 = arith.mulf %22, %20 : vector<128x512xf32>
      %24 = arith.subf %21, %23 : vector<128x512xf32>
      %25 = arith.extui %8 : i1 to i32
      %c0_i32_8 = arith.constant 0 : i32
      %26 = arith.cmpi ne, %25, %c0_i32_8 : i32
      scf.if %26 {
        %30 = vector.extract_strided_slice %24 {offsets = [0, 0], sizes = [8, 512], strides = [1, 1]} : vector<128x512xf32> to vector<8x512xf32>
        %31 = vector.extract_strided_slice %24 {offsets = [8, 0], sizes = [8, 512], strides = [1, 1]} : vector<128x512xf32> to vector<8x512xf32>
        %32 = arith.addf %30, %31 : vector<8x512xf32>
        %33 = vector.extract_strided_slice %24 {offsets = [16, 0], sizes = [8, 512], strides = [1, 1]} : vector<128x512xf32> to vector<8x512xf32>
        %34 = arith.addf %32, %33 : vector<8x512xf32>
        %35 = vector.extract_strided_slice %24 {offsets = [24, 0], sizes = [8, 512], strides = [1, 1]} : vector<128x512xf32> to vector<8x512xf32>
        %36 = arith.addf %34, %35 : vector<8x512xf32>
        %37 = vector.extract_strided_slice %24 {offsets = [32, 0], sizes = [8, 512], strides = [1, 1]} : vector<128x512xf32> to vector<8x512xf32>
        %38 = arith.addf %36, %37 : vector<8x512xf32>
        %39 = vector.extract_strided_slice %24 {offsets = [40, 0], sizes = [8, 512], strides = [1, 1]} : vector<128x512xf32> to vector<8x512xf32>
        %40 = arith.addf %38, %39 : vector<8x512xf32>
        %41 = vector.extract_strided_slice %24 {offsets = [48, 0], sizes = [8, 512], strides = [1, 1]} : vector<128x512xf32> to vector<8x512xf32>
        %42 = arith.addf %40, %41 : vector<8x512xf32>
        %43 = vector.extract_strided_slice %24 {offsets = [56, 0], sizes = [8, 512], strides = [1, 1]} : vector<128x512xf32> to vector<8x512xf32>
        %44 = arith.addf %42, %43 : vector<8x512xf32>
        %45 = vector.extract_strided_slice %24 {offsets = [64, 0], sizes = [8, 512], strides = [1, 1]} : vector<128x512xf32> to vector<8x512xf32>
        %46 = arith.addf %44, %45 : vector<8x512xf32>
        %47 = vector.extract_strided_slice %24 {offsets = [72, 0], sizes = [8, 512], strides = [1, 1]} : vector<128x512xf32> to vector<8x512xf32>
        %48 = arith.addf %46, %47 : vector<8x512xf32>
        %49 = vector.extract_strided_slice %24 {offsets = [80, 0], sizes = [8, 512], strides = [1, 1]} : vector<128x512xf32> to vector<8x512xf32>
        %50 = arith.addf %48, %49 : vector<8x512xf32>
        %51 = vector.extract_strided_slice %24 {offsets = [88, 0], sizes = [8, 512], strides = [1, 1]} : vector<128x512xf32> to vector<8x512xf32>
        %52 = arith.addf %50, %51 : vector<8x512xf32>
        %53 = vector.extract_strided_slice %24 {offsets = [96, 0], sizes = [8, 512], strides = [1, 1]} : vector<128x512xf32> to vector<8x512xf32>
        %54 = arith.addf %52, %53 : vector<8x512xf32>
        %55 = vector.extract_strided_slice %24 {offsets = [104, 0], sizes = [8, 512], strides = [1, 1]} : vector<128x512xf32> to vector<8x512xf32>
        %56 = arith.addf %54, %55 : vector<8x512xf32>
        %57 = vector.extract_strided_slice %24 {offsets = [112, 0], sizes = [8, 512], strides = [1, 1]} : vector<128x512xf32> to vector<8x512xf32>
        %58 = arith.addf %56, %57 : vector<8x512xf32>
        %59 = vector.extract_strided_slice %24 {offsets = [120, 0], sizes = [8, 512], strides = [1, 1]} : vector<128x512xf32> to vector<8x512xf32>
        %60 = arith.addf %58, %59 : vector<8x512xf32>
        %c0_10 = arith.constant 0 : index
        %c0_11 = arith.constant 0 : index
        %61 = vector.load %arg4[%c0_10, %c0_11] : memref<8x512xf32, #tpu.memory_space<vmem>>, vector<8x512xf32>
        %62 = arith.addf %61, %60 : vector<8x512xf32>
        %c0_12 = arith.constant 0 : index
        %c0_13 = arith.constant 0 : index
        %63 = vector.load %arg4[%c0_12, %c0_13] : memref<8x512xf32, #tpu.memory_space<vmem>>, vector<8x512xf32>
        tpu.vector_store %arg4[%c0_12, %c0_13], %62 {strides = array<i32>} : memref<8x512xf32, #tpu.memory_space<vmem>>, vector<8x512xf32>,
      } else {
      }
      %true = arith.constant true
      %27 = arith.xori %8, %true : i1
      %28 = arith.extui %27 : i1 to i32
      %c0_i32_9 = arith.constant 0 : i32
      %29 = arith.cmpi ne, %28, %c0_i32_9 : i32
      scf.if %29 {
        %c0_10 = arith.constant 0 : index
        %c0_11 = arith.constant 0 : index
        %30 = vector.load %arg5[%c0_10, %c0_11] : memref<128x512xi32, #tpu.memory_space<vmem>>, vector<128x512xi32>
        %31 = arith.subi %3, %4 : i32
        %32 = vector.broadcast %31 : i32 to vector<128x512xi32>
        %33 = arith.cmpi sgt, %30, %32 : vector<128x512xi32>
        %34 = arith.extui %33 : vector<128x512xi1> to vector<128x512xi32>
        %35 = arith.sitofp %34 : vector<128x512xi32> to vector<128x512xf32>
        %36 = arith.mulf %24, %35 : vector<128x512xf32>
        %37 = vector.extract_strided_slice %36 {offsets = [0, 0], sizes = [8, 512], strides = [1, 1]} : vector<128x512xf32> to vector<8x512xf32>
        %38 = vector.extract_strided_slice %36 {offsets = [8, 0], sizes = [8, 512], strides = [1, 1]} : vector<128x512xf32> to vector<8x512xf32>
        %39 = arith.addf %37, %38 : vector<8x512xf32>
        %40 = vector.extract_strided_slice %36 {offsets = [16, 0], sizes = [8, 512], strides = [1, 1]} : vector<128x512xf32> to vector<8x512xf32>
        %41 = arith.addf %39, %40 : vector<8x512xf32>
        %42 = vector.extract_strided_slice %36 {offsets = [24, 0], sizes = [8, 512], strides = [1, 1]} : vector<128x512xf32> to vector<8x512xf32>
        %43 = arith.addf %41, %42 : vector<8x512xf32>
        %44 = vector.extract_strided_slice %36 {offsets = [32, 0], sizes = [8, 512], strides = [1, 1]} : vector<128x512xf32> to vector<8x512xf32>
        %45 = arith.addf %43, %44 : vector<8x512xf32>
        %46 = vector.extract_strided_slice %36 {offsets = [40, 0], sizes = [8, 512], strides = [1, 1]} : vector<128x512xf32> to vector<8x512xf32>
        %47 = arith.addf %45, %46 : vector<8x512xf32>
        %48 = vector.extract_strided_slice %36 {offsets = [48, 0], sizes = [8, 512], strides = [1, 1]} : vector<128x512xf32> to vector<8x512xf32>
        %49 = arith.addf %47, %48 : vector<8x512xf32>
        %50 = vector.extract_strided_slice %36 {offsets = [56, 0], sizes = [8, 512], strides = [1, 1]} : vector<128x512xf32> to vector<8x512xf32>
        %51 = arith.addf %49, %50 : vector<8x512xf32>
        %52 = vector.extract_strided_slice %36 {offsets = [64, 0], sizes = [8, 512], strides = [1, 1]} : vector<128x512xf32> to vector<8x512xf32>
        %53 = arith.addf %51, %52 : vector<8x512xf32>
        %54 = vector.extract_strided_slice %36 {offsets = [72, 0], sizes = [8, 512], strides = [1, 1]} : vector<128x512xf32> to vector<8x512xf32>
        %55 = arith.addf %53, %54 : vector<8x512xf32>
        %56 = vector.extract_strided_slice %36 {offsets = [80, 0], sizes = [8, 512], strides = [1, 1]} : vector<128x512xf32> to vector<8x512xf32>
        %57 = arith.addf %55, %56 : vector<8x512xf32>
        %58 = vector.extract_strided_slice %36 {offsets = [88, 0], sizes = [8, 512], strides = [1, 1]} : vector<128x512xf32> to vector<8x512xf32>
        %59 = arith.addf %57, %58 : vector<8x512xf32>
        %60 = vector.extract_strided_slice %36 {offsets = [96, 0], sizes = [8, 512], strides = [1, 1]} : vector<128x512xf32> to vector<8x512xf32>
        %61 = arith.addf %59, %60 : vector<8x512xf32>
        %62 = vector.extract_strided_slice %36 {offsets = [104, 0], sizes = [8, 512], strides = [1, 1]} : vector<128x512xf32> to vector<8x512xf32>
        %63 = arith.addf %61, %62 : vector<8x512xf32>
        %64 = vector.extract_strided_slice %36 {offsets = [112, 0], sizes = [8, 512], strides = [1, 1]} : vector<128x512xf32> to vector<8x512xf32>
        %65 = arith.addf %63, %64 : vector<8x512xf32>
        %66 = vector.extract_strided_slice %36 {offsets = [120, 0], sizes = [8, 512], strides = [1, 1]} : vector<128x512xf32> to vector<8x512xf32>
        %67 = arith.addf %65, %66 : vector<8x512xf32>
        %c0_12 = arith.constant 0 : index
        %c0_13 = arith.constant 0 : index
        %68 = vector.load %arg4[%c0_12, %c0_13] : memref<8x512xf32, #tpu.memory_space<vmem>>, vector<8x512xf32>
        %69 = arith.addf %68, %67 : vector<8x512xf32>
        %c0_14 = arith.constant 0 : index
        %c0_15 = arith.constant 0 : index
        %70 = vector.load %arg4[%c0_14, %c0_15] : memref<8x512xf32, #tpu.memory_space<vmem>>, vector<8x512xf32>
        tpu.vector_store %arg4[%c0_14, %c0_15], %69 {strides = array<i32>} : memref<8x512xf32, #tpu.memory_space<vmem>>, vector<8x512xf32>,
      } else {
      }
    } else {
    }
    return
  }
  func.func @transform_0(%arg0: i32, %arg1: i32) -> (i32, i32) {
    %c0_i32 = arith.constant 0 : i32
    %c0_i32_0 = arith.constant 0 : i32
    return %arg0, %c0_i32 : i32, i32
  }
  func.func @transform_1(%arg0: i32, %arg1: i32) -> (i32, i32) {
    %c0_i32 = arith.constant 0 : i32
    %c0_i32_0 = arith.constant 0 : i32
    return %c0_i32, %arg1 : i32, i32
  }
  func.func @transform_2(%arg0: i32, %arg1: i32) -> (i32, i32) {
    %c0_i32 = arith.constant 0 : i32
    %c0_i32_0 = arith.constant 0 : i32
    return %arg0, %c0_i32 : i32, i32
  }
}

</mosaic_0001>

<llo_original>
// kernel: forward.2
$region0: #{forward.2}
  #allocation0 [shape = 'u32[]', space=smem, size = 0x4, offset = 0x4, fixed_abs, tag = 'smem constant byte address 0x4 - core index']
  #allocation1 [shape = 'u32[72,128]{1,0:T(1,128)}', space=vmem, size = 0x9000, scoped, tag = 'internal scratch']
  %s0 = inlined_call_operand.vmem [shape: f32[9,128], index: 0, kind: input, shape index: {}]
  %s1 = inlined_call_operand.vmem [shape: s32[9,128], index: 1, kind: input, shape index: {}]
  %s2 = inlined_call_operand.vmem [shape: f32[9,128], index: 2, kind: input, shape index: {}]
  %s3 = inlined_call_operand.vmem [shape: f32[16,128], index: 3, kind: output, shape index: {}]
  %s4 = sld [smem:[#allocation0]]
  $region22: #{forward.2} parent=0
    _
  %s6 = ssub.s32 1, %s4
  %s7 = scalar_select 0, %s6, %s4
  // Predicated region
  $region2: #{forward.2} parent=0 // pred_check
    _
  $region3: #{forward.2} parent=0 // pred_check_branch
    %9 = sbr.rel (0) target = $region5
  $region4: #{forward.2} parent=0 // pred_region
    _
  $region5: #{forward.2} parent=0 // pred_fallthru
    _
  // Predicated region
  $region6: #{forward.2} parent=0 // pred_check
    _
  $region7: #{forward.2} parent=0 // pred_check_branch
    %11 = sbr.rel (0) target = $region9
  $region8: #{forward.2} parent=0 // pred_region
    _
  $region9: #{forward.2} parent=0 // pred_fallthru
    _
  // Predicated region
  $region10: #{forward.2} parent=0 // pred_check
    _
  $region11: #{forward.2} parent=0 // pred_check_branch
    %13 = sbr.rel (0) target = $region13
  $region12: #{forward.2} parent=0 // pred_region
    _
  $region13: #{forward.2} parent=0 // pred_fallthru
    _
  %v14 = vld [vmem:[%s1] sm:$0xff]
  %vm15 = vcmp.ne.s32.totalorder %v14, 0
  %v16 = vld [vmem:[%s0] sm:$0xff]
  %v17 = vld [vmem:[%s2] sm:$0xff]
  %v18 = vsel %vm15, %v16, %v17
  %v19 = vand.u32 2147483647, %v18
  %vm20 = vcmp.le.f32.partialorder %v19, 0.7853982
  %vm21 = vcmp.lt.s32.totalorder %v18, 0
  %v22 = vand.u32 %v18, 2139095040
  %v23 = vshrl.u32 %v22, 23
  %v24 = vsub.s32 %v23, 127
  %v25 = vand.u32 2147483647, %v18
  %v26 = vand.u32 %v25, 8388607
  %v27 = vor.u32 %v26, 8388608
  %v28 = vsub.s32 0, %v27
  %v29 = vadd.s32 %v24, 1
  %vm30 = vcmp.gt.s32.totalorder %v29, 0
  %v31 = vsel %vm30, %v29, 0
  %v32 = vshrl.u32 %v31, 5
  %v33 = vand.u32 %v31, 31
  %v34 = vsub.s32 32, %v33
  %v35 = vshrl.u32 683565275, %v34
  %v36 = vshll.u32 683565275, %v33
  %v37 = vshrl.u32 2475754826, %v34
  %v38 = vor.u32 %v36, %v37
  %v39 = vshll.u32 2475754826, %v33
  %v40 = vshrl.u32 2131351028, %v34
  %v41 = vor.u32 %v39, %v40
  %v42 = vshll.u32 2131351028, %v33
  %v43 = vshrl.u32 2102212464, %v34
  %v44 = vor.u32 %v42, %v43
  %v45 = vshll.u32 2102212464, %v33
  %v46 = vshrl.u32 920167782, %v34
  %v47 = vor.u32 %v45, %v46
  %v48 = vshll.u32 920167782, %v33
  %v49 = vshrl.u32 1326507024, %v34
  %v50 = vor.u32 %v48, %v49
  %vm51 = vcmp.lt.s32.totalorder %v32, 1
  %vm52 = vcmp.lt.s32.totalorder %v32, 2
  %vm53 = vcmp.lt.s32.totalorder %v32, 3
  %vm54 = vcmp.lt.s32.totalorder %v32, 4
  %v55 = vsel %vm51, %v35, %v38
  %v56 = vsel %vm54, %v44, 2102212464
  %v57 = vsel %vm53, %v41, %v56
  %v58 = vsel %vm52, %v55, %v57
  %v59 = vsel %vm51, %v38, %v41
  %v60 = vsel %vm54, %v47, 920167782
  %v61 = vsel %vm53, %v44, %v60
  %v62 = vsel %vm52, %v59, %v61
  %v63 = vsel %vm51, %v41, %v44
  %v64 = vsel %vm54, %v50, 1326507024
  %v65 = vsel %vm53, %v47, %v64
  %v66 = vsel %vm52, %v63, %v65
  %v67 = vshll.u32 %v27, 8
  %v68 = vand.u32 %v67, 65535
  %v69 = vshrl.u32 %v67, 16
  %v70 = vand.u32 %v66, 65535
  %v71 = vshrl.u32 %v66, 16
  %v72 = vmul.u32 %v68, %v70
  %v73 = vmul.u32 %v68, %v71
  %v74 = vmul.u32 %v69, %v70
  %v75 = vmul.u32 %v69, %v71
  %v76 = vshll.u32 %v73, 16
  %v77 = vshrl.u32 %v73, 16
  %v78 = vshll.u32 %v74, 16
  %v79 = vshrl.u32 %v74, 16
  %vm80 = vc.u32 %v72, %v76
  %v81 = vsel %vm80, 1, 0
  %v82 = vadd.s32 %v72, %v76
  %v83 = vadd.s32 %v75, %v81
  %vm84 = vc.u32 %v82, %v78
  %v85 = vsel %vm84, 1, 0
  %v86 = vadd.s32 %v82, %v78
  %v87 = vadd.s32 %v83, %v85
  %v88 = vadd.s32 %v87, %v77
  %v89 = vadd.s32 %v88, %v79
  %v90 = vand.u32 %v67, 65535
  %v91 = vshrl.u32 %v67, 16
  %v92 = vand.u32 %v62, 65535
  %v93 = vshrl.u32 %v62, 16
  %v94 = vmul.u32 %v90, %v92
  %v95 = vmul.u32 %v90, %v93
  %v96 = vmul.u32 %v91, %v92
  %v97 = vmul.u32 %v91, %v93
  %v98 = vshll.u32 %v95, 16
  %v99 = vshrl.u32 %v95, 16
  %v100 = vshll.u32 %v96, 16
  %v101 = vshrl.u32 %v96, 16
  %vm102 = vc.u32 %v94, %v98
  %v103 = vsel %vm102, 1, 0
  %v104 = vadd.s32 %v94, %v98
  %v105 = vadd.s32 %v97, %v103
  %vm106 = vc.u32 %v104, %v100
  %v107 = vsel %vm106, 1, 0
  %v108 = vadd.s32 %v104, %v100
  %v109 = vadd.s32 %v105, %v107
  %v110 = vadd.s32 %v109, %v99
  %v111 = vadd.s32 %v110, %v101
  %v112 = vmul.u32 %v67, %v58
  %v113 = vadd.s32 %v89, %v108
  %vm114 = vc.u32 %v89, %v108
  %v115 = vadd.s32 %v111, 1
  %v116 = vsel %vm114, %v115, %v111
  %v117 = vadd.s32 %v112, %v116
  %v118 = vadd.s32 %v117, 536870912
  %v119 = vshrl.u32 %v118, 30
  %v120 = vshll.u32 %v119, 30
  %v121 = vsub.s32 %v117, %v120
  %vm122 = vcmp.lt.s32.totalorder %v121, 0
  %v123 = vsub.s32 0, %v121
  %v124 = vsel %vm122, %v123, %v121
  %v125 = vclz %v124
  %v126 = vsub.s32 %v125, 2
  %vm127 = vcmp.gt.s32.totalorder 0, %v126
  %v128 = vsel %vm127, 0, %v126
  %v129 = vsub.s32 32, %v128
  %v130 = vshll.u32 %v121, %v128
  %v131 = vshrl.u32 %v113, %v129
  %v132 = vor.u32 %v130, %v131
  %v133 = vsub.s32 4294967266, %v128
  %v134 = vadd.s32 %v133, 127
  %v135 = vshll.u32 %v134, 23
  %v136 = vor.u32 4788187, %v135
  %v137 = vand.u32 2147483647, %v136
  %v139 = vcvt.s32.f32 %v132
  %v140 = vmul.f32 %v139, %v137
  %v141 = vxor.u32 %v140, 2147483648
  %v142 = vsel %vm21, %v141, %v140
  %v143 = vsub.s32 4, %v119
  %v144 = vsel %vm21, %v143, %v119
  %v145 = vsel %vm20, %v18, %v142
  %v146 = vsel %vm20, 0, %v144
  %v147 = vmul.f32 %v145, %v145
  %v148 = vmul.f32 %v147, -0.001358992
  %v149 = vadd.f32 %v148, 0.041655596
  %v150 = vmul.f32 %v147, %v149
  %v151 = vadd.f32 %v150, -0.4999988
  %v152 = vmul.f32 %v147, %v151
  %v153 = vadd.f32 1.0, %v152
  %v154 = vmul.f32 %v145, %v145
  %v155 = vmul.f32 %v154, -0.00019511016
  %v156 = vadd.f32 %v155, 0.008332121
  %v157 = vmul.f32 %v154, %v156
  %v158 = vadd.f32 %v157, -0.16666654
  %v159 = vmul.f32 %v154, %v158
  %v160 = vadd.f32 %v159, 1.0
  %v161 = vmul.f32 %v160, %v145
  %vm162 = vweird.f32 %v18
  %v163 = vand.u32 %v146, 3
  %vm164 = vcmp.lt.s32.totalorder %v163, 2
  %vm165 = vcmp.eq.s32.totalorder %v163, 0
  %v166 = vxor.u32 %v161, 2147483648
  %v167 = vsel %vm165, %v153, %v166
  %vm168 = vcmp.eq.s32.totalorder %v163, 2
  %v169 = vxor.u32 %v153, 2147483648
  %v170 = vsel %vm168, %v169, %v161
  %v171 = vsel %vm164, %v167, %v170
  %v172 = vsel %vm162, nan, %v171
  %v173 = vand.u32 2147483647, %v18
  %vm174 = vcmp.le.f32.partialorder %v173, 0.7853982
  %vm175 = vcmp.lt.s32.totalorder %v18, 0
  %v176 = vand.u32 %v18, 2139095040
  %v177 = vshrl.u32 %v176, 23
  %v178 = vsub.s32 %v177, 127
  %v179 = vand.u32 2147483647, %v18
  %v180 = vand.u32 %v179, 8388607
  %v181 = vor.u32 %v180, 8388608
  %v182 = vsub.s32 0, %v181
  %v183 = vadd.s32 %v178, 1
  %vm184 = vcmp.gt.s32.totalorder %v183, 0
  %v185 = vsel %vm184, %v183, 0
  %v186 = vshrl.u32 %v185, 5
  %v187 = vand.u32 %v185, 31
  %v188 = vsub.s32 32, %v187
  %v189 = vshrl.u32 683565275, %v188
  %v190 = vshll.u32 683565275, %v187
  %v191 = vshrl.u32 2475754826, %v188
  %v192 = vor.u32 %v190, %v191
  %v193 = vshll.u32 2475754826, %v187
  %v194 = vshrl.u32 2131351028, %v188
  %v195 = vor.u32 %v193, %v194
  %v196 = vshll.u32 2131351028, %v187
  %v197 = vshrl.u32 2102212464, %v188
  %v198 = vor.u32 %v196, %v197
  %v199 = vshll.u32 2102212464, %v187
  %v200 = vshrl.u32 920167782, %v188
  %v201 = vor.u32 %v199, %v200
  %v202 = vshll.u32 920167782, %v187
  %v203 = vshrl.u32 1326507024, %v188
  %v204 = vor.u32 %v202, %v203
  %vm205 = vcmp.lt.s32.totalorder %v186, 1
  %vm206 = vcmp.lt.s32.totalorder %v186, 2
  %vm207 = vcmp.lt.s32.totalorder %v186, 3
  %vm208 = vcmp.lt.s32.totalorder %v186, 4
  %v209 = vsel %vm205, %v189, %v192
  %v210 = vsel %vm208, %v198, 2102212464
  %v211 = vsel %vm207, %v195, %v210
  %v212 = vsel %vm206, %v209, %v211
  %v213 = vsel %vm205, %v192, %v195
  %v214 = vsel %vm208, %v201, 920167782
  %v215 = vsel %vm207, %v198, %v214
  %v216 = vsel %vm206, %v213, %v215
  %v217 = vsel %vm205, %v195, %v198
  %v218 = vsel %vm208, %v204, 1326507024
  %v219 = vsel %vm207, %v201, %v218
  %v220 = vsel %vm206, %v217, %v219
  %v221 = vshll.u32 %v181, 8
  %v222 = vand.u32 %v221, 65535
  %v223 = vshrl.u32 %v221, 16
  %v224 = vand.u32 %v220, 65535
  %v225 = vshrl.u32 %v220, 16
  %v226 = vmul.u32 %v222, %v224
  %v227 = vmul.u32 %v222, %v225
  %v228 = vmul.u32 %v223, %v224
  %v229 = vmul.u32 %v223, %v225
  %v230 = vshll.u32 %v227, 16
  %v231 = vshrl.u32 %v227, 16
  %v232 = vshll.u32 %v228, 16
  %v233 = vshrl.u32 %v228, 16
  %vm234 = vc.u32 %v226, %v230
  %v235 = vsel %vm234, 1, 0
  %v236 = vadd.s32 %v226, %v230
  %v237 = vadd.s32 %v229, %v235
  %vm238 = vc.u32 %v236, %v232
  %v239 = vsel %vm238, 1, 0
  %v240 = vadd.s32 %v236, %v232
  %v241 = vadd.s32 %v237, %v239
  %v242 = vadd.s32 %v241, %v231
  %v243 = vadd.s32 %v242, %v233
  %v244 = vand.u32 %v221, 65535
  %v245 = vshrl.u32 %v221, 16
  %v246 = vand.u32 %v216, 65535
  %v247 = vshrl.u32 %v216, 16
  %v248 = vmul.u32 %v244, %v246
  %v249 = vmul.u32 %v244, %v247
  %v250 = vmul.u32 %v245, %v246
  %v251 = vmul.u32 %v245, %v247
  %v252 = vshll.u32 %v249, 16
  %v253 = vshrl.u32 %v249, 16
  %v254 = vshll.u32 %v250, 16
  %v255 = vshrl.u32 %v250, 16
  %vm256 = vc.u32 %v248, %v252
  %v257 = vsel %vm256, 1, 0
  %v258 = vadd.s32 %v248, %v252
  %v259 = vadd.s32 %v251, %v257
  %vm260 = vc.u32 %v258, %v254
  %v261 = vsel %vm260, 1, 0
  %v262 = vadd.s32 %v258, %v254
  %v263 = vadd.s32 %v259, %v261
  %v264 = vadd.s32 %v263, %v253
  %v265 = vadd.s32 %v264, %v255
  %v266 = vmul.u32 %v221, %v212
  %v267 = vadd.s32 %v243, %v262
  %vm268 = vc.u32 %v243, %v262
  %v269 = vadd.s32 %v265, 1
  %v270 = vsel %vm268, %v269, %v265
  %v271 = vadd.s32 %v266, %v270
  %v272 = vadd.s32 %v271, 536870912
  %v273 = vshrl.u32 %v272, 30
  %v274 = vshll.u32 %v273, 30
  %v275 = vsub.s32 %v271, %v274
  %vm276 = vcmp.lt.s32.totalorder %v275, 0
  %v277 = vsub.s32 0, %v275
  %v278 = vsel %vm276, %v277, %v275
  %v279 = vclz %v278
  %v280 = vsub.s32 %v279, 2
  %vm281 = vcmp.gt.s32.totalorder 0, %v280
  %v282 = vsel %vm281, 0, %v280
  %v283 = vsub.s32 32, %v282
  %v284 = vshll.u32 %v275, %v282
  %v285 = vshrl.u32 %v267, %v283
  %v286 = vor.u32 %v284, %v285
  %v287 = vsub.s32 4294967266, %v282
  %v288 = vadd.s32 %v287, 127
  %v289 = vshll.u32 %v288, 23
  %v290 = vor.u32 4788187, %v289
  %v291 = vand.u32 2147483647, %v290
  %v293 = vcvt.s32.f32 %v286
  %v294 = vmul.f32 %v293, %v291
  %v295 = vxor.u32 %v294, 2147483648
  %v296 = vsel %vm175, %v295, %v294
  %v297 = vsub.s32 4, %v273
  %v298 = vsel %vm175, %v297, %v273
  %v299 = vsel %vm174, %v18, %v296
  %v300 = vsel %vm174, 0, %v298
  %v301 = vmul.f32 %v299, %v299
  %v302 = vmul.f32 %v301, -0.001358992
  %v303 = vadd.f32 %v302, 0.041655596
  %v304 = vmul.f32 %v301, %v303
  %v305 = vadd.f32 %v304, -0.4999988
  %v306 = vmul.f32 %v301, %v305
  %v307 = vadd.f32 1.0, %v306
  %v308 = vmul.f32 %v299, %v299
  %v309 = vmul.f32 %v308, -0.00019511016
  %v310 = vadd.f32 %v309, 0.008332121
  %v311 = vmul.f32 %v308, %v310
  %v312 = vadd.f32 %v311, -0.16666654
  %v313 = vmul.f32 %v308, %v312
  %v314 = vadd.f32 %v313, 1.0
  %v315 = vmul.f32 %v314, %v299
  %vm316 = vweird.f32 %v18
  %v317 = vadd.s32 %v300, 3
  %v318 = vand.u32 %v317, 3
  %vm319 = vcmp.lt.s32.totalorder %v318, 2
  %vm320 = vcmp.eq.s32.totalorder %v318, 0
  %v321 = vxor.u32 %v315, 2147483648
  %v322 = vsel %vm320, %v307, %v321
  %vm323 = vcmp.eq.s32.totalorder %v318, 2
  %v324 = vxor.u32 %v307, 2147483648
  %v325 = vsel %vm323, %v324, %v315
  %v326 = vsel %vm319, %v322, %v325
  %v327 = vsel %vm316, nan, %v326
  %v328 = vsub.f32 0.0, %v327
  %v330 = vrot.slane %v18, 1
  %v332 = vmul.f32 %v172, %v330
  %v334 = vrot.slane %v327, 1
  %v336 = vmul.f32 %v172, %v334
  %v338 = vrot.slane %v172, 1
  %v340 = vmul.f32 %v172, %v338
  %v341 = vrot.slane %v18, 2
  %v343 = vmul.f32 %v336, %v341
  %v344 = vmul.f32 %v327, %v334
  %v345 = vmul.f32 %v327, %v338
  %v346 = vmul.f32 %v344, %v341
  %347 = vst [vmem:[%s3 - $0x1] sm:$0x2] %v172
  %348 = vst [vmem:[%s3] sm:$0x2] %v328
  %349 = vst [vmem:[%s3 + $0x2] sm:$0x1] 0.0
  %350 = vst [vmem:[%s3 + $0x2] sm:$0x2] %v332
  %351 = vst [vmem:[%s3 + $0x4] sm:$0x1] %v336
  %352 = vst [vmem:[%s3 + $0x5] sm:$0x1] %v340
  %353 = vst [vmem:[%s3 + $0x6] sm:$0x1] %v328
  %354 = vst [vmem:[%s3 + $0x7] sm:$0x1] %v343
  %355 = vst [vmem:[%s3 + $0x8] sm:$0x1] %v344
  %356 = vst [vmem:[%s3 + $0x9] sm:$0x1] %v345
  %357 = vst [vmem:[%s3 + $0xa] sm:$0x1] %v172
  %358 = vst [vmem:[%s3 + $0xb] sm:$0x1] %v346
  %359 = vst [vmem:[%s3 + $0xc] sm:$0x1] 0.0
  %360 = vst [vmem:[%s3 + $0xd] sm:$0x1] 0.0
  %361 = vst [vmem:[%s3 + $0xe] sm:$0x1] 0.0
  %362 = vst [vmem:[%s3 + $0xf] sm:$0x1] 1.0
  // Predicated region
  $region14: #{forward.2} parent=0 // pred_check
    _
  $region15: #{forward.2} parent=0 // pred_check_branch
    %364 = sbr.rel (0) target = $region17
  $region16: #{forward.2} parent=0 // pred_region
    _
  $region17: #{forward.2} parent=0 // pred_fallthru
    _
  // Predicated region
  $region18: #{forward.2} parent=0 // pred_check
    _
  $region19: #{forward.2} parent=0 // pred_check_branch
    %366 = sbr.rel (0) target = $region21
  $region20: #{forward.2} parent=0 // pred_region
    _
  $region21: #{forward.2} parent=0 // pred_fallthru
    _

// kernel: forward.3
$region0: #{forward.3}
  #allocation0 [shape = 'u32[]', space=smem, size = 0x4, offset = 0x4, fixed_abs, tag = 'smem constant byte address 0x4 - core index']
  #allocation1 [shape = 'u32[72,128]{1,0:T(1,128)}', space=vmem, size = 0x9000, scoped, tag = 'internal scratch']
  #allocation2 [shape = 's32[128,512]{1,0:T(8,128)}', space=vmem, size = 0x40000, scoped, tag = 'scratch operand']
  %s0 = inlined_call_operand.vmem [shape: f32[512,8], index: 0, kind: input, shape index: {}]
  %s1 = inlined_call_operand.vmem [shape: f32[8,512], index: 1, kind: input, shape index: {}]
  %s2 = inlined_call_operand.vmem [shape: f32[32,512], index: 2, kind: output, shape index: {}]
  %s3 = sld [smem:[#allocation0]]
  $region57: #{forward.3} parent=0
    _
  %s5 = ssub.s32 1, %s3
  %s6 = scalar_select 0, %s5, %s3
  loop: start=0, step=1, limit=6
  $region2: #{forward.3} parent=0 // loop_pre_header
    _
  $region3: #{forward.3} parent=0 // loop_header
    %s8 = sphi 0, %s12
    %p9 = scmp.ge.s32.totalorder %s8, 6
    %s15 = sphi 0, %s27
    %s16 = sphi 0, %s23
    %s17 = sphi 0, %s15
    %s18 = sphi 0, %s16
    %s19 = sphi 0, %s17
    %s20 = sphi 0, %s18
    %s30 = sphi 0, %s32
    %s33 = sphi 0, %s30
    %s34 = sphi 0, %s33
    %s50 = sphi 0, %s34
    %s56 = sphi 0, %s58
    %s59 = sphi 0, %s56
    %s60 = sphi 0, %s59
    %s76 = sphi 0, %s60
    %s82 = sphi 0, %s84
    %s85 = sphi 0, %s82
    %s86 = sphi 0, %s85
    %s102 = sphi 0, %s86
  $region4: #{forward.3} parent=0 // loop_header_branch
    %11 = sbr.rel (%p9) target = $region8
  $region5: #{forward.3} parent=0 // loop_body
    %s13 = ssub.s32 %s8, 1
    %s14 = ssub.s32 %s8, 2
    %s21 = sadd.s32 1, %s16
    %p22 = scmp.ge.s32.totalorder %s21, 1
    %s23 = scalar_select %p22, 0, %s21
    %s24 = sadd.s32 1, %s15
    %s25 = scalar_select %p22, %s24, %s15
    %p26 = scmp.ge.s32.totalorder %s25, 4
    %s27 = scalar_select %p26, 0, %s25
    %s28 = ssub.s32 %s15, %s27
    %p29 = scmp.eq.s32.totalorder %s28, 0
    %s31 = sadd.s32 %s30, 1
    %s32 = scalar_select %p29, %s30, %s31
    %p35 = pneg %p29
    %p36 = scmp.eq.s32.totalorder %s8, 3
    %p37 = por %p35, %p36
    %p38 = scmp.ne.s32.totalorder %s30, %s33
    %p39 = scmp.eq.s32.totalorder %s8, 0
    %p40 = por %p38, %p39
    %p41 = scmp.ne.s32.totalorder %s30, %s33
    %p42 = scmp.eq.s32.totalorder %s13, 3
    %p43 = por %p41, %p42
    %p44 = scmp.ne.s32.totalorder %s33, %s34
    %p45 = scmp.eq.s32.totalorder %s13, 0
    %p46 = por %p44, %p45
    %p47 = scmp.ne.s32.totalorder %s33, %s34
    %p48 = scmp.eq.s32.totalorder %s14, 3
    %p49 = por %p47, %p48
    %p51 = scmp.ne.s32.totalorder %s34, %s50
    %p52 = scmp.eq.s32.totalorder %s14, 0
    %p53 = por %p51, %p52
    %s54 = ssub.s32 %s16, %s23
    %p55 = scmp.eq.s32.totalorder %s54, 0
    %s57 = sadd.s32 %s56, 1
    %s58 = scalar_select %p55, %s56, %s57
    %p61 = pneg %p55
    %p62 = scmp.eq.s32.totalorder %s8, 3
    %p63 = por %p61, %p62
    %p64 = scmp.ne.s32.totalorder %s56, %s59
    %p65 = scmp.eq.s32.totalorder %s8, 0
    %p66 = por %p64, %p65
    %p67 = scmp.ne.s32.totalorder %s56, %s59
    %p68 = scmp.eq.s32.totalorder %s13, 3
    %p69 = por %p67, %p68
    %p70 = scmp.ne.s32.totalorder %s59, %s60
    %p71 = scmp.eq.s32.totalorder %s13, 0
    %p72 = por %p70, %p71
    %p73 = scmp.ne.s32.totalorder %s59, %s60
    %p74 = scmp.eq.s32.totalorder %s14, 3
    %p75 = por %p73, %p74
    %p77 = scmp.ne.s32.totalorder %s60, %s76
    %p78 = scmp.eq.s32.totalorder %s14, 0
    %p79 = por %p77, %p78
    %s80 = ssub.s32 %s15, %s27
    %p81 = scmp.eq.s32.totalorder %s80, 0
    %s83 = sadd.s32 %s82, 1
    %s84 = scalar_select %p81, %s82, %s83
    %p87 = pneg %p81
    %p88 = scmp.eq.s32.totalorder %s8, 3
    %p89 = por %p87, %p88
    %p90 = scmp.ne.s32.totalorder %s82, %s85
    %p91 = scmp.eq.s32.totalorder %s8, 0
    %p92 = por %p90, %p91
    %p93 = scmp.ne.s32.totalorder %s82, %s85
    %p94 = scmp.eq.s32.totalorder %s13, 3
    %p95 = por %p93, %p94
    %p96 = scmp.ne.s32.totalorder %s85, %s86
    %p97 = scmp.eq.s32.totalorder %s13, 0
    %p98 = por %p96, %p97
    %p99 = scmp.ne.s32.totalorder %s85, %s86
    %p100 = scmp.eq.s32.totalorder %s14, 3
    %p101 = por %p99, %p100
    %p103 = scmp.ne.s32.totalorder %s86, %s102
    %p104 = scmp.eq.s32.totalorder %s14, 0
    %p105 = por %p103, %p104
    %p106 = scmp.le.s32.totalorder 1, %s8
    %p107 = scmp.lt.s32.totalorder %s8, 5
    %p108 = pnand %p106, %p107
    %p109 = pneg %p108
    // Predicated region
    $region9: #{forward.3} parent=5 // pred_check
      _
    $region10: #{forward.3} parent=5 // pred_check_branch
      %111 = sbr.rel (%p108) target = $region12
    $region11: #{forward.3} parent=5 // pred_region
      %s112 = ssub.s32 %s8, 1
      // Predicated region
      $region13: #{forward.3} parent=11 // pred_check
        %p113 = pneg %p72
      $region14: #{forward.3} parent=11 // pred_check_branch
        %115 = sbr.rel (%p113) target = $region16
      $region15: #{forward.3} parent=11 // pred_region
        %s116 = smul.u32 4, %s18
        %p117 = scmp.lt.s32.totalorder %s116, 3
        %s118 = scalar_select %p117, %s116, 3
        %s119 = smul.addr %s118, 8
        %s120 = scalar_lea.vmem %s1, %s119
        %s121 = smul.u32 4, %s18
      $region16: #{forward.3} parent=11 // pred_fallthru
        _
    $region12: #{forward.3} parent=5 // pred_fallthru
      _
    %p122 = scmp.lt.s32.totalorder %s8, 4
    // Predicated region
    $region17: #{forward.3} parent=5 // pred_check
      %p123 = pneg %p122
    $region18: #{forward.3} parent=5 // pred_check_branch
      %125 = sbr.rel (%p123) target = $region20
    $region19: #{forward.3} parent=5 // pred_region
      // Predicated region
      $region21: #{forward.3} parent=19 // pred_check
        %p126 = pneg %p40
      $region22: #{forward.3} parent=19 // pred_check_branch
        %128 = sbr.rel (%p126) target = $region24
      $region23: #{forward.3} parent=19 // pred_region
        %s129 = smul.u32 16, %s15
        %p130 = scmp.lt.s32.totalorder %s129, 63
        %s131 = scalar_select %p130, %s129, 63
        %s132 = smul.addr %s131, 8
        %s133 = scalar_lea.vmem %s0, %s132
        %s134 = smul.u32 16, %s15
      $region24: #{forward.3} parent=19 // pred_fallthru
        _
    $region20: #{forward.3} parent=5 // pred_fallthru
      _
    %p135 = scmp.le.s32.totalorder 1, %s8
    %p136 = scmp.lt.s32.totalorder %s8, 5
    %p137 = pnand %p135, %p136
    %p138 = pneg %p137
    // Predicated region
    $region25: #{forward.3} parent=5 // pred_check
      _
    $region26: #{forward.3} parent=5 // pred_check_branch
      %140 = sbr.rel (%p137) target = $region28
    $region27: #{forward.3} parent=5 // pred_region
      %s141 = ssub.s32 %s8, 1
      %s142 = smul.u32 16, %s17
      %p143 = scmp.lt.s32.totalorder %s142, 63
      %s144 = scalar_select %p143, %s142, 63
      %s145 = smul.addr %s144, 8
      %s146 = scalar_lea.vmem %s0, %s145
      %p147 = pneg %p46
      %p148 = pneg %p43
      %s149 = smul.u32 4, %s18
      %p150 = scmp.lt.s32.totalorder %s149, 3
      %s151 = scalar_select %p150, %s149, 3
      %s152 = smul.addr %s151, 8
      %s153 = scalar_lea.vmem %s1, %s152
      %p154 = pneg %p72
      %p155 = pneg %p69
      %p156 = pneg %p98
      %p157 = pneg %p95
      %p158 = scmp.lt.s32.totalorder %s17, 3
      %s159 = scalar_select %p158, %s17, 3
      %s160 = smul.addr %s159, 4
      %s161 = smul.addr %s160, 8
      %s162 = scalar_lea.vmem %s2, %s161
      %s163 = smul.u32 16, %s17
      %p164 = scmp.lt.s32.totalorder %s163, 63
      %s165 = scalar_select %p164, %s163, 63
      %s166 = smul.addr %s165, 8
      %s167 = scalar_lea.vmem %s0, %s166
      %s168 = smul.u32 16, %s17
      %s169 = smul.u32 4, %s18
      %p170 = scmp.lt.s32.totalorder %s169, 3
      %s171 = scalar_select %p170, %s169, 3
      %s172 = smul.addr %s171, 8
      %s173 = scalar_lea.vmem %s1, %s172
      %s174 = smul.u32 4, %s18
      %p175 = scmp.lt.s32.totalorder %s17, 3
      %s176 = scalar_select %p175, %s17, 3
      %s177 = smul.addr %s176, 4
      %s178 = smul.addr %s177, 8
      %s179 = scalar_lea.vmem %s2, %s178
      %p180 = scmp.eq.s32.totalorder %s18, 0
      // Predicated region
      $region29: #{forward.3} parent=27 // pred_check
        %p181 = pneg %p180
      $region30: #{forward.3} parent=27 // pred_check_branch
        %183 = sbr.rel (%p181) target = $region32
      $region31: #{forward.3} parent=27 // pred_region
        %184 = vst [vmem:[%s179] sm:$0xff] 0.0
        %185 = vst [vmem:[%s179 + $0x8] sm:$0xff] 0.0
        %186 = vst [vmem:[%s179 + $0x10] sm:$0xff] 0.0
        %187 = vst [vmem:[%s179 + $0x18] sm:$0xff] 0.0
        %v188 = vlaneseq
        %v189 = vshrl.u32 %v188, 7
        %v190 = vadd.s32 %v189, 8
        %v191 = vadd.s32 %v189, 16
        %v192 = vadd.s32 %v189, 24
        %v193 = vadd.s32 %v189, 32
        %v194 = vadd.s32 %v189, 40
        %v195 = vadd.s32 %v189, 48
        %v196 = vadd.s32 %v189, 56
        %v197 = vadd.s32 %v189, 64
        %v198 = vadd.s32 %v189, 72
        %v199 = vadd.s32 %v189, 80
        %v200 = vadd.s32 %v189, 88
        %v201 = vadd.s32 %v189, 96
        %v202 = vadd.s32 %v189, 104
        %v203 = vadd.s32 %v189, 112
        %v204 = vadd.s32 %v189, 120
        %v205 = vlaneseq
        %v206 = vand.u32 %v205, 127
        %v207 = vadd.s32 %v206, 128
        %v208 = vadd.s32 %v206, 256
        %v209 = vadd.s32 %v206, 384
        %v210 = vsub.s32 %v206, %v189
        %v211 = vsub.s32 %v207, %v189
        %v212 = vsub.s32 %v208, %v189
        %v213 = vsub.s32 %v209, %v189
        %v214 = vsub.s32 %v206, %v190
        %v215 = vsub.s32 %v207, %v190
        %v216 = vsub.s32 %v208, %v190
        %v217 = vsub.s32 %v209, %v190
        %v218 = vsub.s32 %v206, %v191
        %v219 = vsub.s32 %v207, %v191
        %v220 = vsub.s32 %v208, %v191
        %v221 = vsub.s32 %v209, %v191
        %v222 = vsub.s32 %v206, %v192
        %v223 = vsub.s32 %v207, %v192
        %v224 = vsub.s32 %v208, %v192
        %v225 = vsub.s32 %v209, %v192
        %v226 = vsub.s32 %v206, %v193
        %v227 = vsub.s32 %v207, %v193
        %v228 = vsub.s32 %v208, %v193
        %v229 = vsub.s32 %v209, %v193
        %v230 = vsub.s32 %v206, %v194
        %v231 = vsub.s32 %v207, %v194
        %v232 = vsub.s32 %v208, %v194
        %v233 = vsub.s32 %v209, %v194
        %v234 = vsub.s32 %v206, %v195
        %v235 = vsub.s32 %v207, %v195
        %v236 = vsub.s32 %v208, %v195
        %v237 = vsub.s32 %v209, %v195
        %v238 = vsub.s32 %v206, %v196
        %v239 = vsub.s32 %v207, %v196
        %v240 = vsub.s32 %v208, %v196
        %v241 = vsub.s32 %v209, %v196
        %v242 = vsub.s32 %v206, %v197
        %v243 = vsub.s32 %v207, %v197
        %v244 = vsub.s32 %v208, %v197
        %v245 = vsub.s32 %v209, %v197
        %v246 = vsub.s32 %v206, %v198
        %v247 = vsub.s32 %v207, %v198
        %v248 = vsub.s32 %v208, %v198
        %v249 = vsub.s32 %v209, %v198
        %v250 = vsub.s32 %v206, %v199
        %v251 = vsub.s32 %v207, %v199
        %v252 = vsub.s32 %v208, %v199
        %v253 = vsub.s32 %v209, %v199
        %v254 = vsub.s32 %v206, %v200
        %v255 = vsub.s32 %v207, %v200
        %v256 = vsub.s32 %v208, %v200
        %v257 = vsub.s32 %v209, %v200
        %v258 = vsub.s32 %v206, %v201
        %v259 = vsub.s32 %v207, %v201
        %v260 = vsub.s32 %v208, %v201
        %v261 = vsub.s32 %v209, %v201
        %v262 = vsub.s32 %v206, %v202
        %v263 = vsub.s32 %v207, %v202
        %v264 = vsub.s32 %v208, %v202
        %v265 = vsub.s32 %v209, %v202
        %v266 = vsub.s32 %v206, %v203
        %v267 = vsub.s32 %v207, %v203
        %v268 = vsub.s32 %v208, %v203
        %v269 = vsub.s32 %v209, %v203
        %v270 = vsub.s32 %v206, %v204
        %v271 = vsub.s32 %v207, %v204
        %v272 = vsub.s32 %v208, %v204
        %v273 = vsub.s32 %v209, %v204
        %274 = vst [vmem:[#allocation2] sm:$0xff] %v210
        %275 = vst [vmem:[#allocation2 + $0x8] sm:$0xff] %v211
        %276 = vst [vmem:[#allocation2 + $0x10] sm:$0xff] %v212
        %277 = vst [vmem:[#allocation2 + $0x18] sm:$0xff] %v213
        %278 = vst [vmem:[#allocation2 + $0x20] sm:$0xff] %v214
        %279 = vst [vmem:[#allocation2 + $0x28] sm:$0xff] %v215
        %280 = vst [vmem:[#allocation2 + $0x30] sm:$0xff] %v216
        %281 = vst [vmem:[#allocation2 + $0x38] sm:$0xff] %v217
        %282 = vst [vmem:[#allocation2 + $0x40] sm:$0xff] %v218
        %283 = vst [vmem:[#allocation2 + $0x48] sm:$0xff] %v219
        %284 = vst [vmem:[#allocation2 + $0x50] sm:$0xff] %v220
        %285 = vst [vmem:[#allocation2 + $0x58] sm:$0xff] %v221
        %286 = vst [vmem:[#allocation2 + $0x60] sm:$0xff] %v222
        %287 = vst [vmem:[#allocation2 + $0x68] sm:$0xff] %v223
        %288 = vst [vmem:[#allocation2 + $0x70] sm:$0xff] %v224
        %289 = vst [vmem:[#allocation2 + $0x78] sm:$0xff] %v225
        %290 = vst [vmem:[#allocation2 + $0x80] sm:$0xff] %v226
        %291 = vst [vmem:[#allocation2 + $0x88] sm:$0xff] %v227
        %292 = vst [vmem:[#allocation2 + $0x90] sm:$0xff] %v228
        %293 = vst [vmem:[#allocation2 + $0x98] sm:$0xff] %v229
        %294 = vst [vmem:[#allocation2 + $0xa0] sm:$0xff] %v230
        %295 = vst [vmem:[#allocation2 + $0xa8] sm:$0xff] %v231
        %296 = vst [vmem:[#allocation2 + $0xb0] sm:$0xff] %v232
        %297 = vst [vmem:[#allocation2 + $0xb8] sm:$0xff] %v233
        %298 = vst [vmem:[#allocation2 + $0xc0] sm:$0xff] %v234
        %299 = vst [vmem:[#allocation2 + $0xc8] sm:$0xff] %v235
        %300 = vst [vmem:[#allocation2 + $0xd0] sm:$0xff] %v236
        %301 = vst [vmem:[#allocation2 + $0xd8] sm:$0xff] %v237
        %302 = vst [vmem:[#allocation2 + $0xe0] sm:$0xff] %v238
        %303 = vst [vmem:[#allocation2 + $0xe8] sm:$0xff] %v239
        %304 = vst [vmem:[#allocation2 + $0xf0] sm:$0xff] %v240
        %305 = vst [vmem:[#allocation2 + $0xf8] sm:$0xff] %v241
        %306 = vst [vmem:[#allocation2 + $0x100] sm:$0xff] %v242
        %307 = vst [vmem:[#allocation2 + $0x108] sm:$0xff] %v243
        %308 = vst [vmem:[#allocation2 + $0x110] sm:$0xff] %v244
        %309 = vst [vmem:[#allocation2 + $0x118] sm:$0xff] %v245
        %310 = vst [vmem:[#allocation2 + $0x120] sm:$0xff] %v246
        %311 = vst [vmem:[#allocation2 + $0x128] sm:$0xff] %v247
        %312 = vst [vmem:[#allocation2 + $0x130] sm:$0xff] %v248
        %313 = vst [vmem:[#allocation2 + $0x138] sm:$0xff] %v249
        %314 = vst [vmem:[#allocation2 + $0x140] sm:$0xff] %v250
        %315 = vst [vmem:[#allocation2 + $0x148] sm:$0xff] %v251
        %316 = vst [vmem:[#allocation2 + $0x150] sm:$0xff] %v252
        %317 = vst [vmem:[#allocation2 + $0x158] sm:$0xff] %v253
        %318 = vst [vmem:[#allocation2 + $0x160] sm:$0xff] %v254
        %319 = vst [vmem:[#allocation2 + $0x168] sm:$0xff] %v255
        %320 = vst [vmem:[#allocation2 + $0x170] sm:$0xff] %v256
        %321 = vst [vmem:[#allocation2 + $0x178] sm:$0xff] %v257
        %322 = vst [vmem:[#allocation2 + $0x180] sm:$0xff] %v258
        %323 = vst [vmem:[#allocation2 + $0x188] sm:$0xff] %v259
        %324 = vst [vmem:[#allocation2 + $0x190] sm:$0xff] %v260
        %325 = vst [vmem:[#allocation2 + $0x198] sm:$0xff] %v261
        %326 = vst [vmem:[#allocation2 + $0x1a0] sm:$0xff] %v262
        %327 = vst [vmem:[#allocation2 + $0x1a8] sm:$0xff] %v263
        %328 = vst [vmem:[#allocation2 + $0x1b0] sm:$0xff] %v264
        %329 = vst [vmem:[#allocation2 + $0x1b8] sm:$0xff] %v265
        %330 = vst [vmem:[#allocation2 + $0x1c0] sm:$0xff] %v266
        %331 = vst [vmem:[#allocation2 + $0x1c8] sm:$0xff] %v267
        %332 = vst [vmem:[#allocation2 + $0x1d0] sm:$0xff] %v268
        %333 = vst [vmem:[#allocation2 + $0x1d8] sm:$0xff] %v269
        %334 = vst [vmem:[#allocation2 + $0x1e0] sm:$0xff] %v270
        %335 = vst [vmem:[#allocation2 + $0x1e8] sm:$0xff] %v271
        %336 = vst [vmem:[#allocation2 + $0x1f0] sm:$0xff] %v272
        %337 = vst [vmem:[#allocation2 + $0x1f8] sm:$0xff] %v273
      $region32: #{forward.3} parent=27 // pred_fallthru
        _
      %s338 = smul.u32 %s17, 128
      %s339 = smul.u32 %s18, 512
      %s340 = sadd.s32 %s339, 511
      %p341 = scmp.gt.s32.totalorder %s340, %s338
      %s342 = sadd.s32 %s338, 127
      %p343 = scmp.gt.s32.totalorder %s339, %s342
      // Predicated region
      $region33: #{forward.3} parent=27 // pred_check
        %p344 = pneg %p341
      $region34: #{forward.3} parent=27 // pred_check_branch
        %346 = sbr.rel (%p344) target = $region36
      $region35: #{forward.3} parent=27 // pred_region
        %v347 = vld [vmem:[%s167] sm:$0xff]
        %v348 = vld [vmem:[%s167 + $0x8] sm:$0xff]
        %v349 = vld [vmem:[%s167 + $0x10] sm:$0xff]
        %v350 = vld [vmem:[%s167 + $0x18] sm:$0xff]
        %v351 = vld [vmem:[%s167 + $0x20] sm:$0xff]
        %v352 = vld [vmem:[%s167 + $0x28] sm:$0xff]
        %v353 = vld [vmem:[%s167 + $0x30] sm:$0xff]
        %v354 = vld [vmem:[%s167 + $0x38] sm:$0xff]
        %v355 = vld [vmem:[%s167 + $0x40] sm:$0xff]
        %v356 = vld [vmem:[%s167 + $0x48] sm:$0xff]
        %v357 = vld [vmem:[%s167 + $0x50] sm:$0xff]
        %v358 = vld [vmem:[%s167 + $0x58] sm:$0xff]
        %v359 = vld [vmem:[%s167 + $0x60] sm:$0xff]
        %v360 = vld [vmem:[%s167 + $0x68] sm:$0xff]
        %v361 = vld [vmem:[%s167 + $0x70] sm:$0xff]
        %v362 = vld [vmem:[%s167 + $0x78] sm:$0xff]
        %v363 = vld [vmem:[%s173] sm:$0xff]
        %v364 = vld [vmem:[%s173 + $0x8] sm:$0xff]
        %v365 = vld [vmem:[%s173 + $0x10] sm:$0xff]
        %v366 = vld [vmem:[%s173 + $0x18] sm:$0xff]
        %vm367 = vcmask 64512
        %v369 = vsel %vm367, %v347, 0
        %v372 = vsel %vm367, %v348, 0
        %v375 = vsel %vm367, %v349, 0
        %v378 = vsel %vm367, %v350, 0
        %v381 = vsel %vm367, %v351, 0
        %v384 = vsel %vm367, %v352, 0
        %v387 = vsel %vm367, %v353, 0
        %v390 = vsel %vm367, %v354, 0
        %v393 = vsel %vm367, %v355, 0
        %v396 = vsel %vm367, %v356, 0
        %v399 = vsel %vm367, %v357, 0
        %v402 = vsel %vm367, %v358, 0
        %v405 = vsel %vm367, %v359, 0
        %v408 = vsel %vm367, %v360, 0
        %v411 = vsel %vm367, %v361, 0
        %v414 = vsel %vm367, %v362, 0
        %416 = vmatpush.msra.mxu0 0.0
        %417 = vmatpush.msra.mxu0 0.0
        %418 = vmatpush.msra.mxu0 0.0
        %419 = vmatpush.msra.mxu0 0.0
        %420 = vmatpush.msra.mxu0 0.0
        %421 = vmatpush.msra.mxu0 0.0
        %422 = vmatpush.msra.mxu0 0.0
        %423 = vmatpush.msra.mxu0 0.0
        %424 = vmatpush.msra.mxu0 0.0
        %425 = vmatpush.msra.mxu0 0.0
        %426 = vmatpush.msra.mxu0 0.0
        %427 = vmatpush.msra.mxu0 0.0
        %428 = vmatpush.msra.mxu0 0.0
        %429 = vmatpush.msra.mxu0 0.0
        %430 = vmatpush.msra.mxu0 0.0
        %431 = vmatpush.msra.mxu0 %v363
        %432 = vmatmul.f32.gmra.mxu0 %v369
        %v433 = vpop.f32.mrf.mxu0
        %v434 = vadd.f32 0.001, %v433
        %435 = vmatmul.f32.gmra.mxu0 %v372
        %v436 = vpop.f32.mrf.mxu0
        %v437 = vadd.f32 0.001, %v436
        %438 = vmatmul.f32.gmra.mxu0 %v375
        %v439 = vpop.f32.mrf.mxu0
        %v440 = vadd.f32 0.001, %v439
        %441 = vmatmul.f32.gmra.mxu0 %v378
        %v442 = vpop.f32.mrf.mxu0
        %v443 = vadd.f32 0.001, %v442
        %444 = vmatmul.f32.gmra.mxu0 %v381
        %v445 = vpop.f32.mrf.mxu0
        %v446 = vadd.f32 0.001, %v445
        %447 = vmatmul.f32.gmra.mxu0 %v384
        %v448 = vpop.f32.mrf.mxu0
        %v449 = vadd.f32 0.001, %v448
        %450 = vmatmul.f32.gmra.mxu0 %v387
        %v451 = vpop.f32.mrf.mxu0
        %v452 = vadd.f32 0.001, %v451
        %453 = vmatmul.f32.gmra.mxu0 %v390
        %v454 = vpop.f32.mrf.mxu0
        %v455 = vadd.f32 0.001, %v454
        %456 = vmatmul.f32.gmra.mxu0 %v393
        %v457 = vpop.f32.mrf.mxu0
        %v458 = vadd.f32 0.001, %v457
        %459 = vmatmul.f32.gmra.mxu0 %v396
        %v460 = vpop.f32.mrf.mxu0
        %v461 = vadd.f32 0.001, %v460
        %462 = vmatmul.f32.gmra.mxu0 %v399
        %v463 = vpop.f32.mrf.mxu0
        %v464 = vadd.f32 0.001, %v463
        %465 = vmatmul.f32.gmra.mxu0 %v402
        %v466 = vpop.f32.mrf.mxu0
        %v467 = vadd.f32 0.001, %v466
        %468 = vmatmul.f32.gmra.mxu0 %v405
        %v469 = vpop.f32.mrf.mxu0
        %v470 = vadd.f32 0.001, %v469
        %471 = vmatmul.f32.gmra.mxu0 %v408
        %v472 = vpop.f32.mrf.mxu0
        %v473 = vadd.f32 0.001, %v472
        %474 = vmatmul.f32.gmra.mxu0 %v411
        %v475 = vpop.f32.mrf.mxu0
        %v476 = vadd.f32 0.001, %v475
        %477 = vmatmul.f32.gmra.mxu0 %v414
        %v478 = vpop.f32.mrf.mxu0
        %v479 = vadd.f32 0.001, %v478
        %480 = vdwg.mxu0
        %481 = vmatpush.msra.mxu0 0.0
        %482 = vmatpush.msra.mxu0 0.0
        %483 = vmatpush.msra.mxu0 0.0
        %484 = vmatpush.msra.mxu0 0.0
        %485 = vmatpush.msra.mxu0 0.0
        %486 = vmatpush.msra.mxu0 0.0
        %487 = vmatpush.msra.mxu0 0.0
        %488 = vmatpush.msra.mxu0 0.0
        %489 = vmatpush.msra.mxu0 0.0
        %490 = vmatpush.msra.mxu0 0.0
        %491 = vmatpush.msra.mxu0 0.0
        %492 = vmatpush.msra.mxu0 0.0
        %493 = vmatpush.msra.mxu0 0.0
        %494 = vmatpush.msra.mxu0 0.0
        %495 = vmatpush.msra.mxu0 0.0
        %496 = vmatpush.msra.mxu0 %v364
        %497 = vmatmul.f32.gmra.mxu0 %v369
        %v498 = vpop.f32.mrf.mxu0
        %v499 = vadd.f32 0.001, %v498
        %500 = vmatmul.f32.gmra.mxu0 %v372
        %v501 = vpop.f32.mrf.mxu0
        %v502 = vadd.f32 0.001, %v501
        %503 = vmatmul.f32.gmra.mxu0 %v375
        %v504 = vpop.f32.mrf.mxu0
        %v505 = vadd.f32 0.001, %v504
        %506 = vmatmul.f32.gmra.mxu0 %v378
        %v507 = vpop.f32.mrf.mxu0
        %v508 = vadd.f32 0.001, %v507
        %509 = vmatmul.f32.gmra.mxu0 %v381
        %v510 = vpop.f32.mrf.mxu0
        %v511 = vadd.f32 0.001, %v510
        %512 = vmatmul.f32.gmra.mxu0 %v384
        %v513 = vpop.f32.mrf.mxu0
        %v514 = vadd.f32 0.001, %v513
        %515 = vmatmul.f32.gmra.mxu0 %v387
        %v516 = vpop.f32.mrf.mxu0
        %v517 = vadd.f32 0.001, %v516
        %518 = vmatmul.f32.gmra.mxu0 %v390
        %v519 = vpop.f32.mrf.mxu0
        %v520 = vadd.f32 0.001, %v519
        %521 = vmatmul.f32.gmra.mxu0 %v393
        %v522 = vpop.f32.mrf.mxu0
        %v523 = vadd.f32 0.001, %v522
        %524 = vmatmul.f32.gmra.mxu0 %v396
        %v525 = vpop.f32.mrf.mxu0
        %v526 = vadd.f32 0.001, %v525
        %527 = vmatmul.f32.gmra.mxu0 %v399
        %v528 = vpop.f32.mrf.mxu0
        %v529 = vadd.f32 0.001, %v528
        %530 = vmatmul.f32.gmra.mxu0 %v402
        %v531 = vpop.f32.mrf.mxu0
        %v532 = vadd.f32 0.001, %v531
        %533 = vmatmul.f32.gmra.mxu0 %v405
        %v534 = vpop.f32.mrf.mxu0
        %v535 = vadd.f32 0.001, %v534
        %536 = vmatmul.f32.gmra.mxu0 %v408
        %v537 = vpop.f32.mrf.mxu0
        %v538 = vadd.f32 0.001, %v537
        %539 = vmatmul.f32.gmra.mxu0 %v411
        %v540 = vpop.f32.mrf.mxu0
        %v541 = vadd.f32 0.001, %v540
        %542 = vmatmul.f32.gmra.mxu0 %v414
        %v543 = vpop.f32.mrf.mxu0
        %v544 = vadd.f32 0.001, %v543
        %545 = vdwg.mxu0
        %546 = vmatpush.msra.mxu0 0.0
        %547 = vmatpush.msra.mxu0 0.0
        %548 = vmatpush.msra.mxu0 0.0
        %549 = vmatpush.msra.mxu0 0.0
        %550 = vmatpush.msra.mxu0 0.0
        %551 = vmatpush.msra.mxu0 0.0
        %552 = vmatpush.msra.mxu0 0.0
        %553 = vmatpush.msra.mxu0 0.0
        %554 = vmatpush.msra.mxu0 0.0
        %555 = vmatpush.msra.mxu0 0.0
        %556 = vmatpush.msra.mxu0 0.0
        %557 = vmatpush.msra.mxu0 0.0
        %558 = vmatpush.msra.mxu0 0.0
        %559 = vmatpush.msra.mxu0 0.0
        %560 = vmatpush.msra.mxu0 0.0
        %561 = vmatpush.msra.mxu0 %v365
        %562 = vmatmul.f32.gmra.mxu0 %v369
        %v563 = vpop.f32.mrf.mxu0
        %v564 = vadd.f32 0.001, %v563
        %565 = vmatmul.f32.gmra.mxu0 %v372
        %v566 = vpop.f32.mrf.mxu0
        %v567 = vadd.f32 0.001, %v566
        %568 = vmatmul.f32.gmra.mxu0 %v375
        %v569 = vpop.f32.mrf.mxu0
        %v570 = vadd.f32 0.001, %v569
        %571 = vmatmul.f32.gmra.mxu0 %v378
        %v572 = vpop.f32.mrf.mxu0
        %v573 = vadd.f32 0.001, %v572
        %574 = vmatmul.f32.gmra.mxu0 %v381
        %v575 = vpop.f32.mrf.mxu0
        %v576 = vadd.f32 0.001, %v575
        %577 = vmatmul.f32.gmra.mxu0 %v384
        %v578 = vpop.f32.mrf.mxu0
        %v579 = vadd.f32 0.001, %v578
        %580 = vmatmul.f32.gmra.mxu0 %v387
        %v581 = vpop.f32.mrf.mxu0
        %v582 = vadd.f32 0.001, %v581
        %583 = vmatmul.f32.gmra.mxu0 %v390
        %v584 = vpop.f32.mrf.mxu0
        %v585 = vadd.f32 0.001, %v584
        %586 = vmatmul.f32.gmra.mxu0 %v393
        %v587 = vpop.f32.mrf.mxu0
        %v588 = vadd.f32 0.001, %v587
        %589 = vmatmul.f32.gmra.mxu0 %v396
        %v590 = vpop.f32.mrf.mxu0
        %v591 = vadd.f32 0.001, %v590
        %592 = vmatmul.f32.gmra.mxu0 %v399
        %v593 = vpop.f32.mrf.mxu0
        %v594 = vadd.f32 0.001, %v593
        %595 = vmatmul.f32.gmra.mxu0 %v402
        %v596 = vpop.f32.mrf.mxu0
        %v597 = vadd.f32 0.001, %v596
        %598 = vmatmul.f32.gmra.mxu0 %v405
        %v599 = vpop.f32.mrf.mxu0
        %v600 = vadd.f32 0.001, %v599
        %601 = vmatmul.f32.gmra.mxu0 %v408
        %v602 = vpop.f32.mrf.mxu0
        %v603 = vadd.f32 0.001, %v602
        %604 = vmatmul.f32.gmra.mxu0 %v411
        %v605 = vpop.f32.mrf.mxu0
        %v606 = vadd.f32 0.001, %v605
        %607 = vmatmul.f32.gmra.mxu0 %v414
        %v608 = vpop.f32.mrf.mxu0
        %v609 = vadd.f32 0.001, %v608
        %610 = vdwg.mxu0
        %611 = vmatpush.msra.mxu0 0.0
        %612 = vmatpush.msra.mxu0 0.0
        %613 = vmatpush.msra.mxu0 0.0
        %614 = vmatpush.msra.mxu0 0.0
        %615 = vmatpush.msra.mxu0 0.0
        %616 = vmatpush.msra.mxu0 0.0
        %617 = vmatpush.msra.mxu0 0.0
        %618 = vmatpush.msra.mxu0 0.0
        %619 = vmatpush.msra.mxu0 0.0
        %620 = vmatpush.msra.mxu0 0.0
        %621 = vmatpush.msra.mxu0 0.0
        %622 = vmatpush.msra.mxu0 0.0
        %623 = vmatpush.msra.mxu0 0.0
        %624 = vmatpush.msra.mxu0 0.0
        %625 = vmatpush.msra.mxu0 0.0
        %626 = vmatpush.msra.mxu0 %v366
        %627 = vmatmul.f32.gmra.mxu0 %v369
        %v628 = vpop.f32.mrf.mxu0
        %v629 = vadd.f32 0.001, %v628
        %630 = vmatmul.f32.gmra.mxu0 %v372
        %v631 = vpop.f32.mrf.mxu0
        %v632 = vadd.f32 0.001, %v631
        %633 = vmatmul.f32.gmra.mxu0 %v375
        %v634 = vpop.f32.mrf.mxu0
        %v635 = vadd.f32 0.001, %v634
        %636 = vmatmul.f32.gmra.mxu0 %v378
        %v637 = vpop.f32.mrf.mxu0
        %v638 = vadd.f32 0.001, %v637
        %639 = vmatmul.f32.gmra.mxu0 %v381
        %v640 = vpop.f32.mrf.mxu0
        %v641 = vadd.f32 0.001, %v640
        %642 = vmatmul.f32.gmra.mxu0 %v384
        %v643 = vpop.f32.mrf.mxu0
        %v644 = vadd.f32 0.001, %v643
        %645 = vmatmul.f32.gmra.mxu0 %v387
        %v646 = vpop.f32.mrf.mxu0
        %v647 = vadd.f32 0.001, %v646
        %648 = vmatmul.f32.gmra.mxu0 %v390
        %v649 = vpop.f32.mrf.mxu0
        %v650 = vadd.f32 0.001, %v649
        %651 = vmatmul.f32.gmra.mxu0 %v393
        %v652 = vpop.f32.mrf.mxu0
        %v653 = vadd.f32 0.001, %v652
        %654 = vmatmul.f32.gmra.mxu0 %v396
        %v655 = vpop.f32.mrf.mxu0
        %v656 = vadd.f32 0.001, %v655
        %657 = vmatmul.f32.gmra.mxu0 %v399
        %v658 = vpop.f32.mrf.mxu0
        %v659 = vadd.f32 0.001, %v658
        %660 = vmatmul.f32.gmra.mxu0 %v402
        %v661 = vpop.f32.mrf.mxu0
        %v662 = vadd.f32 0.001, %v661
        %663 = vmatmul.f32.gmra.mxu0 %v405
        %v664 = vpop.f32.mrf.mxu0
        %v665 = vadd.f32 0.001, %v664
        %666 = vmatmul.f32.gmra.mxu0 %v408
        %v667 = vpop.f32.mrf.mxu0
        %v668 = vadd.f32 0.001, %v667
        %669 = vmatmul.f32.gmra.mxu0 %v411
        %v670 = vpop.f32.mrf.mxu0
        %v671 = vadd.f32 0.001, %v670
        %672 = vmatmul.f32.gmra.mxu0 %v414
        %v673 = vpop.f32.mrf.mxu0
        %v674 = vadd.f32 0.001, %v673
        %675 = vdwg.mxu0
        %v676 = vrcp.pop %v434
        %v677 = vrcp.pop %v499
        %v678 = vrcp.pop %v564
        %v679 = vrcp.pop %v629
        %v680 = vrcp.pop %v437
        %v681 = vrcp.pop %v502
        %v682 = vrcp.pop %v567
        %v683 = vrcp.pop %v632
        %v684 = vrcp.pop %v440
        %v685 = vrcp.pop %v505
        %v686 = vrcp.pop %v570
        %v687 = vrcp.pop %v635
        %v688 = vrcp.pop %v443
        %v689 = vrcp.pop %v508
        %v690 = vrcp.pop %v573
        %v691 = vrcp.pop %v638
        %v692 = vrcp.pop %v446
        %v693 = vrcp.pop %v511
        %v694 = vrcp.pop %v576
        %v695 = vrcp.pop %v641
        %v696 = vrcp.pop %v449
        %v697 = vrcp.pop %v514
        %v698 = vrcp.pop %v579
        %v699 = vrcp.pop %v644
        %v700 = vrcp.pop %v452
        %v701 = vrcp.pop %v517
        %v702 = vrcp.pop %v582
        %v703 = vrcp.pop %v647
        %v704 = vrcp.pop %v455
        %v705 = vrcp.pop %v520
        %v706 = vrcp.pop %v585
        %v707 = vrcp.pop %v650
        %v708 = vrcp.pop %v458
        %v709 = vrcp.pop %v523
        %v710 = vrcp.pop %v588
        %v711 = vrcp.pop %v653
        %v712 = vrcp.pop %v461
        %v713 = vrcp.pop %v526
        %v714 = vrcp.pop %v591
        %v715 = vrcp.pop %v656
        %v716 = vrcp.pop %v464
        %v717 = vrcp.pop %v529
        %v718 = vrcp.pop %v594
        %v719 = vrcp.pop %v659
        %v720 = vrcp.pop %v467
        %v721 = vrcp.pop %v532
        %v722 = vrcp.pop %v597
        %v723 = vrcp.pop %v662
        %v724 = vrcp.pop %v470
        %v725 = vrcp.pop %v535
        %v726 = vrcp.pop %v600
        %v727 = vrcp.pop %v665
        %v728 = vrcp.pop %v473
        %v729 = vrcp.pop %v538
        %v730 = vrcp.pop %v603
        %v731 = vrcp.pop %v668
        %v732 = vrcp.pop %v476
        %v733 = vrcp.pop %v541
        %v734 = vrcp.pop %v606
        %v735 = vrcp.pop %v671
        %v736 = vrcp.pop %v479
        %v737 = vrcp.pop %v544
        %v738 = vrcp.pop %v609
        %v739 = vrcp.pop %v674
        %v740 = vmul.f32 %v676, 2.25
        %v741 = vmul.f32 %v677, 2.25
        %v742 = vmul.f32 %v678, 2.25
        %v743 = vmul.f32 %v679, 2.25
        %v744 = vmul.f32 %v680, 2.25
        %v745 = vmul.f32 %v681, 2.25
        %v746 = vmul.f32 %v682, 2.25
        %v747 = vmul.f32 %v683, 2.25
        %v748 = vmul.f32 %v684, 2.25
        %v749 = vmul.f32 %v685, 2.25
        %v750 = vmul.f32 %v686, 2.25
        %v751 = vmul.f32 %v687, 2.25
        %v752 = vmul.f32 %v688, 2.25
        %v753 = vmul.f32 %v689, 2.25
        %v754 = vmul.f32 %v690, 2.25
        %v755 = vmul.f32 %v691, 2.25
        %v756 = vmul.f32 %v692, 2.25
        %v757 = vmul.f32 %v693, 2.25
        %v758 = vmul.f32 %v694, 2.25
        %v759 = vmul.f32 %v695, 2.25
        %v760 = vmul.f32 %v696, 2.25
        %v761 = vmul.f32 %v697, 2.25
        %v762 = vmul.f32 %v698, 2.25
        %v763 = vmul.f32 %v699, 2.25
        %v764 = vmul.f32 %v700, 2.25
        %v765 = vmul.f32 %v701, 2.25
        %v766 = vmul.f32 %v702, 2.25
        %v767 = vmul.f32 %v703, 2.25
        %v768 = vmul.f32 %v704, 2.25
        %v769 = vmul.f32 %v705, 2.25
        %v770 = vmul.f32 %v706, 2.25
        %v771 = vmul.f32 %v707, 2.25
        %v772 = vmul.f32 %v708, 2.25
        %v773 = vmul.f32 %v709, 2.25
        %v774 = vmul.f32 %v710, 2.25
        %v775 = vmul.f32 %v711, 2.25
        %v776 = vmul.f32 %v712, 2.25
        %v777 = vmul.f32 %v713, 2.25
        %v778 = vmul.f32 %v714, 2.25
        %v779 = vmul.f32 %v715, 2.25
        %v780 = vmul.f32 %v716, 2.25
        %v781 = vmul.f32 %v717, 2.25
        %v782 = vmul.f32 %v718, 2.25
        %v783 = vmul.f32 %v719, 2.25
        %v784 = vmul.f32 %v720, 2.25
        %v785 = vmul.f32 %v721, 2.25
        %v786 = vmul.f32 %v722, 2.25
        %v787 = vmul.f32 %v723, 2.25
        %v788 = vmul.f32 %v724, 2.25
        %v789 = vmul.f32 %v725, 2.25
        %v790 = vmul.f32 %v726, 2.25
        %v791 = vmul.f32 %v727, 2.25
        %v792 = vmul.f32 %v728, 2.25
        %v793 = vmul.f32 %v729, 2.25
        %v794 = vmul.f32 %v730, 2.25
        %v795 = vmul.f32 %v731, 2.25
        %v796 = vmul.f32 %v732, 2.25
        %v797 = vmul.f32 %v733, 2.25
        %v798 = vmul.f32 %v734, 2.25
        %v799 = vmul.f32 %v735, 2.25
        %v800 = vmul.f32 %v736, 2.25
        %v801 = vmul.f32 %v737, 2.25
        %v802 = vmul.f32 %v738, 2.25
        %v803 = vmul.f32 %v739, 2.25
        %v804 = vmul.f32 %v740, %v740
        %v805 = vmul.f32 %v741, %v741
        %v806 = vmul.f32 %v742, %v742
        %v807 = vmul.f32 %v743, %v743
        %v808 = vmul.f32 %v744, %v744
        %v809 = vmul.f32 %v745, %v745
        %v810 = vmul.f32 %v746, %v746
        %v811 = vmul.f32 %v747, %v747
        %v812 = vmul.f32 %v748, %v748
        %v813 = vmul.f32 %v749, %v749
        %v814 = vmul.f32 %v750, %v750
        %v815 = vmul.f32 %v751, %v751
        %v816 = vmul.f32 %v752, %v752
        %v817 = vmul.f32 %v753, %v753
        %v818 = vmul.f32 %v754, %v754
        %v819 = vmul.f32 %v755, %v755
        %v820 = vmul.f32 %v756, %v756
        %v821 = vmul.f32 %v757, %v757
        %v822 = vmul.f32 %v758, %v758
        %v823 = vmul.f32 %v759, %v759
        %v824 = vmul.f32 %v760, %v760
        %v825 = vmul.f32 %v761, %v761
        %v826 = vmul.f32 %v762, %v762
        %v827 = vmul.f32 %v763, %v763
        %v828 = vmul.f32 %v764, %v764
        %v829 = vmul.f32 %v765, %v765
        %v830 = vmul.f32 %v766, %v766
        %v831 = vmul.f32 %v767, %v767
        %v832 = vmul.f32 %v768, %v768
        %v833 = vmul.f32 %v769, %v769
        %v834 = vmul.f32 %v770, %v770
        %v835 = vmul.f32 %v771, %v771
        %v836 = vmul.f32 %v772, %v772
        %v837 = vmul.f32 %v773, %v773
        %v838 = vmul.f32 %v774, %v774
        %v839 = vmul.f32 %v775, %v775
        %v840 = vmul.f32 %v776, %v776
        %v841 = vmul.f32 %v777, %v777
        %v842 = vmul.f32 %v778, %v778
        %v843 = vmul.f32 %v779, %v779
        %v844 = vmul.f32 %v780, %v780
        %v845 = vmul.f32 %v781, %v781
        %v846 = vmul.f32 %v782, %v782
        %v847 = vmul.f32 %v783, %v783
        %v848 = vmul.f32 %v784, %v784
        %v849 = vmul.f32 %v785, %v785
        %v850 = vmul.f32 %v786, %v786
        %v851 = vmul.f32 %v787, %v787
        %v852 = vmul.f32 %v788, %v788
        %v853 = vmul.f32 %v789, %v789
        %v854 = vmul.f32 %v790, %v790
        %v855 = vmul.f32 %v791, %v791
        %v856 = vmul.f32 %v792, %v792
        %v857 = vmul.f32 %v793, %v793
        %v858 = vmul.f32 %v794, %v794
        %v859 = vmul.f32 %v795, %v795
        %v860 = vmul.f32 %v796, %v796
        %v861 = vmul.f32 %v797, %v797
        %v862 = vmul.f32 %v798, %v798
        %v863 = vmul.f32 %v799, %v799
        %v864 = vmul.f32 %v800, %v800
        %v865 = vmul.f32 %v801, %v801
        %v866 = vmul.f32 %v802, %v802
        %v867 = vmul.f32 %v803, %v803
        %v868 = vmul.f32 %v804, %v740
        %v869 = vmul.f32 %v805, %v741
        %v870 = vmul.f32 %v806, %v742
        %v871 = vmul.f32 %v807, %v743
        %v872 = vmul.f32 %v808, %v744
        %v873 = vmul.f32 %v809, %v745
        %v874 = vmul.f32 %v810, %v746
        %v875 = vmul.f32 %v811, %v747
        %v876 = vmul.f32 %v812, %v748
        %v877 = vmul.f32 %v813, %v749
        %v878 = vmul.f32 %v814, %v750
        %v879 = vmul.f32 %v815, %v751
        %v880 = vmul.f32 %v816, %v752
        %v881 = vmul.f32 %v817, %v753
        %v882 = vmul.f32 %v818, %v754
        %v883 = vmul.f32 %v819, %v755
        %v884 = vmul.f32 %v820, %v756
        %v885 = vmul.f32 %v821, %v757
        %v886 = vmul.f32 %v822, %v758
        %v887 = vmul.f32 %v823, %v759
        %v888 = vmul.f32 %v824, %v760
        %v889 = vmul.f32 %v825, %v761
        %v890 = vmul.f32 %v826, %v762
        %v891 = vmul.f32 %v827, %v763
        %v892 = vmul.f32 %v828, %v764
        %v893 = vmul.f32 %v829, %v765
        %v894 = vmul.f32 %v830, %v766
        %v895 = vmul.f32 %v831, %v767
        %v896 = vmul.f32 %v832, %v768
        %v897 = vmul.f32 %v833, %v769
        %v898 = vmul.f32 %v834, %v770
        %v899 = vmul.f32 %v835, %v771
        %v900 = vmul.f32 %v836, %v772
        %v901 = vmul.f32 %v837, %v773
        %v902 = vmul.f32 %v838, %v774
        %v903 = vmul.f32 %v839, %v775
        %v904 = vmul.f32 %v840, %v776
        %v905 = vmul.f32 %v841, %v777
        %v906 = vmul.f32 %v842, %v778
        %v907 = vmul.f32 %v843, %v779
        %v908 = vmul.f32 %v844, %v780
        %v909 = vmul.f32 %v845, %v781
        %v910 = vmul.f32 %v846, %v782
        %v911 = vmul.f32 %v847, %v783
        %v912 = vmul.f32 %v848, %v784
        %v913 = vmul.f32 %v849, %v785
        %v914 = vmul.f32 %v850, %v786
        %v915 = vmul.f32 %v851, %v787
        %v916 = vmul.f32 %v852, %v788
        %v917 = vmul.f32 %v853, %v789
        %v918 = vmul.f32 %v854, %v790
        %v919 = vmul.f32 %v855, %v791
        %v920 = vmul.f32 %v856, %v792
        %v921 = vmul.f32 %v857, %v793
        %v922 = vmul.f32 %v858, %v794
        %v923 = vmul.f32 %v859, %v795
        %v924 = vmul.f32 %v860, %v796
        %v925 = vmul.f32 %v861, %v797
        %v926 = vmul.f32 %v862, %v798
        %v927 = vmul.f32 %v863, %v799
        %v928 = vmul.f32 %v864, %v800
        %v929 = vmul.f32 %v865, %v801
        %v930 = vmul.f32 %v866, %v802
        %v931 = vmul.f32 %v867, %v803
        %v932 = vmul.f32 %v868, %v868
        %v933 = vmul.f32 %v869, %v869
        %v934 = vmul.f32 %v870, %v870
        %v935 = vmul.f32 %v871, %v871
        %v936 = vmul.f32 %v872, %v872
        %v937 = vmul.f32 %v873, %v873
        %v938 = vmul.f32 %v874, %v874
        %v939 = vmul.f32 %v875, %v875
        %v940 = vmul.f32 %v876, %v876
        %v941 = vmul.f32 %v877, %v877
        %v942 = vmul.f32 %v878, %v878
        %v943 = vmul.f32 %v879, %v879
        %v944 = vmul.f32 %v880, %v880
        %v945 = vmul.f32 %v881, %v881
        %v946 = vmul.f32 %v882, %v882
        %v947 = vmul.f32 %v883, %v883
        %v948 = vmul.f32 %v884, %v884
        %v949 = vmul.f32 %v885, %v885
        %v950 = vmul.f32 %v886, %v886
        %v951 = vmul.f32 %v887, %v887
        %v952 = vmul.f32 %v888, %v888
        %v953 = vmul.f32 %v889, %v889
        %v954 = vmul.f32 %v890, %v890
        %v955 = vmul.f32 %v891, %v891
        %v956 = vmul.f32 %v892, %v892
        %v957 = vmul.f32 %v893, %v893
        %v958 = vmul.f32 %v894, %v894
        %v959 = vmul.f32 %v895, %v895
        %v960 = vmul.f32 %v896, %v896
        %v961 = vmul.f32 %v897, %v897
        %v962 = vmul.f32 %v898, %v898
        %v963 = vmul.f32 %v899, %v899
        %v964 = vmul.f32 %v900, %v900
        %v965 = vmul.f32 %v901, %v901
        %v966 = vmul.f32 %v902, %v902
        %v967 = vmul.f32 %v903, %v903
        %v968 = vmul.f32 %v904, %v904
        %v969 = vmul.f32 %v905, %v905
        %v970 = vmul.f32 %v906, %v906
        %v971 = vmul.f32 %v907, %v907
        %v972 = vmul.f32 %v908, %v908
        %v973 = vmul.f32 %v909, %v909
        %v974 = vmul.f32 %v910, %v910
        %v975 = vmul.f32 %v911, %v911
        %v976 = vmul.f32 %v912, %v912
        %v977 = vmul.f32 %v913, %v913
        %v978 = vmul.f32 %v914, %v914
        %v979 = vmul.f32 %v915, %v915
        %v980 = vmul.f32 %v916, %v916
        %v981 = vmul.f32 %v917, %v917
        %v982 = vmul.f32 %v918, %v918
        %v983 = vmul.f32 %v919, %v919
        %v984 = vmul.f32 %v920, %v920
        %v985 = vmul.f32 %v921, %v921
        %v986 = vmul.f32 %v922, %v922
        %v987 = vmul.f32 %v923, %v923
        %v988 = vmul.f32 %v924, %v924
        %v989 = vmul.f32 %v925, %v925
        %v990 = vmul.f32 %v926, %v926
        %v991 = vmul.f32 %v927, %v927
        %v992 = vmul.f32 %v928, %v928
        %v993 = vmul.f32 %v929, %v929
        %v994 = vmul.f32 %v930, %v930
        %v995 = vmul.f32 %v931, %v931
        %v996 = vmul.f32 %v868, 2.0
        %v997 = vmul.f32 %v869, 2.0
        %v998 = vmul.f32 %v870, 2.0
        %v999 = vmul.f32 %v871, 2.0
        %v1000 = vmul.f32 %v872, 2.0
        %v1001 = vmul.f32 %v873, 2.0
        %v1002 = vmul.f32 %v874, 2.0
        %v1003 = vmul.f32 %v875, 2.0
        %v1004 = vmul.f32 %v876, 2.0
        %v1005 = vmul.f32 %v877, 2.0
        %v1006 = vmul.f32 %v878, 2.0
        %v1007 = vmul.f32 %v879, 2.0
        %v1008 = vmul.f32 %v880, 2.0
        %v1009 = vmul.f32 %v881, 2.0
        %v1010 = vmul.f32 %v882, 2.0
        %v1011 = vmul.f32 %v883, 2.0
        %v1012 = vmul.f32 %v884, 2.0
        %v1013 = vmul.f32 %v885, 2.0
        %v1014 = vmul.f32 %v886, 2.0
        %v1015 = vmul.f32 %v887, 2.0
        %v1016 = vmul.f32 %v888, 2.0
        %v1017 = vmul.f32 %v889, 2.0
        %v1018 = vmul.f32 %v890, 2.0
        %v1019 = vmul.f32 %v891, 2.0
        %v1020 = vmul.f32 %v892, 2.0
        %v1021 = vmul.f32 %v893, 2.0
        %v1022 = vmul.f32 %v894, 2.0
        %v1023 = vmul.f32 %v895, 2.0
        %v1024 = vmul.f32 %v896, 2.0
        %v1025 = vmul.f32 %v897, 2.0
        %v1026 = vmul.f32 %v898, 2.0
        %v1027 = vmul.f32 %v899, 2.0
        %v1028 = vmul.f32 %v900, 2.0
        %v1029 = vmul.f32 %v901, 2.0
        %v1030 = vmul.f32 %v902, 2.0
        %v1031 = vmul.f32 %v903, 2.0
        %v1032 = vmul.f32 %v904, 2.0
        %v1033 = vmul.f32 %v905, 2.0
        %v1034 = vmul.f32 %v906, 2.0
        %v1035 = vmul.f32 %v907, 2.0
        %v1036 = vmul.f32 %v908, 2.0
        %v1037 = vmul.f32 %v909, 2.0
        %v1038 = vmul.f32 %v910, 2.0
        %v1039 = vmul.f32 %v911, 2.0
        %v1040 = vmul.f32 %v912, 2.0
        %v1041 = vmul.f32 %v913, 2.0
        %v1042 = vmul.f32 %v914, 2.0
        %v1043 = vmul.f32 %v915, 2.0
        %v1044 = vmul.f32 %v916, 2.0
        %v1045 = vmul.f32 %v917, 2.0
        %v1046 = vmul.f32 %v918, 2.0
        %v1047 = vmul.f32 %v919, 2.0
        %v1048 = vmul.f32 %v920, 2.0
        %v1049 = vmul.f32 %v921, 2.0
        %v1050 = vmul.f32 %v922, 2.0
        %v1051 = vmul.f32 %v923, 2.0
        %v1052 = vmul.f32 %v924, 2.0
        %v1053 = vmul.f32 %v925, 2.0
        %v1054 = vmul.f32 %v926, 2.0
        %v1055 = vmul.f32 %v927, 2.0
        %v1056 = vmul.f32 %v928, 2.0
        %v1057 = vmul.f32 %v929, 2.0
        %v1058 = vmul.f32 %v930, 2.0
        %v1059 = vmul.f32 %v931, 2.0
        %v1060 = vsub.f32 %v932, %v996
        %v1061 = vsub.f32 %v933, %v997
        %v1062 = vsub.f32 %v934, %v998
        %v1063 = vsub.f32 %v935, %v999
        %v1064 = vsub.f32 %v936, %v1000
        %v1065 = vsub.f32 %v937, %v1001
        %v1066 = vsub.f32 %v938, %v1002
        %v1067 = vsub.f32 %v939, %v1003
        %v1068 = vsub.f32 %v940, %v1004
        %v1069 = vsub.f32 %v941, %v1005
        %v1070 = vsub.f32 %v942, %v1006
        %v1071 = vsub.f32 %v943, %v1007
        %v1072 = vsub.f32 %v944, %v1008
        %v1073 = vsub.f32 %v945, %v1009
        %v1074 = vsub.f32 %v946, %v1010
        %v1075 = vsub.f32 %v947, %v1011
        %v1076 = vsub.f32 %v948, %v1012
        %v1077 = vsub.f32 %v949, %v1013
        %v1078 = vsub.f32 %v950, %v1014
        %v1079 = vsub.f32 %v951, %v1015
        %v1080 = vsub.f32 %v952, %v1016
        %v1081 = vsub.f32 %v953, %v1017
        %v1082 = vsub.f32 %v954, %v1018
        %v1083 = vsub.f32 %v955, %v1019
        %v1084 = vsub.f32 %v956, %v1020
        %v1085 = vsub.f32 %v957, %v1021
        %v1086 = vsub.f32 %v958, %v1022
        %v1087 = vsub.f32 %v959, %v1023
        %v1088 = vsub.f32 %v960, %v1024
        %v1089 = vsub.f32 %v961, %v1025
        %v1090 = vsub.f32 %v962, %v1026
        %v1091 = vsub.f32 %v963, %v1027
        %v1092 = vsub.f32 %v964, %v1028
        %v1093 = vsub.f32 %v965, %v1029
        %v1094 = vsub.f32 %v966, %v1030
        %v1095 = vsub.f32 %v967, %v1031
        %v1096 = vsub.f32 %v968, %v1032
        %v1097 = vsub.f32 %v969, %v1033
        %v1098 = vsub.f32 %v970, %v1034
        %v1099 = vsub.f32 %v971, %v1035
        %v1100 = vsub.f32 %v972, %v1036
        %v1101 = vsub.f32 %v973, %v1037
        %v1102 = vsub.f32 %v974, %v1038
        %v1103 = vsub.f32 %v975, %v1039
        %v1104 = vsub.f32 %v976, %v1040
        %v1105 = vsub.f32 %v977, %v1041
        %v1106 = vsub.f32 %v978, %v1042
        %v1107 = vsub.f32 %v979, %v1043
        %v1108 = vsub.f32 %v980, %v1044
        %v1109 = vsub.f32 %v981, %v1045
        %v1110 = vsub.f32 %v982, %v1046
        %v1111 = vsub.f32 %v983, %v1047
        %v1112 = vsub.f32 %v984, %v1048
        %v1113 = vsub.f32 %v985, %v1049
        %v1114 = vsub.f32 %v986, %v1050
        %v1115 = vsub.f32 %v987, %v1051
        %v1116 = vsub.f32 %v988, %v1052
        %v1117 = vsub.f32 %v989, %v1053
        %v1118 = vsub.f32 %v990, %v1054
        %v1119 = vsub.f32 %v991, %v1055
        %v1120 = vsub.f32 %v992, %v1056
        %v1121 = vsub.f32 %v993, %v1057
        %v1122 = vsub.f32 %v994, %v1058
        %v1123 = vsub.f32 %v995, %v1059
        // Predicated region
        $region37: #{forward.3} parent=35 // pred_check
          %p1124 = pneg %p343
        $region38: #{forward.3} parent=35 // pred_check_branch
          %1126 = sbr.rel (%p1124) target = $region40
        $region39: #{forward.3} parent=35 // pred_region
          %v1127 = vadd.f32 %v1060, %v1064
          %v1128 = vadd.f32 %v1061, %v1065
          %v1129 = vadd.f32 %v1062, %v1066
          %v1130 = vadd.f32 %v1063, %v1067
          %v1131 = vadd.f32 %v1127, %v1068
          %v1132 = vadd.f32 %v1128, %v1069
          %v1133 = vadd.f32 %v1129, %v1070
          %v1134 = vadd.f32 %v1130, %v1071
          %v1135 = vadd.f32 %v1131, %v1072
          %v1136 = vadd.f32 %v1132, %v1073
          %v1137 = vadd.f32 %v1133, %v1074
          %v1138 = vadd.f32 %v1134, %v1075
          %v1139 = vadd.f32 %v1135, %v1076
          %v1140 = vadd.f32 %v1136, %v1077
          %v1141 = vadd.f32 %v1137, %v1078
          %v1142 = vadd.f32 %v1138, %v1079
          %v1143 = vadd.f32 %v1139, %v1080
          %v1144 = vadd.f32 %v1140, %v1081
          %v1145 = vadd.f32 %v1141, %v1082
          %v1146 = vadd.f32 %v1142, %v1083
          %v1147 = vadd.f32 %v1143, %v1084
          %v1148 = vadd.f32 %v1144, %v1085
          %v1149 = vadd.f32 %v1145, %v1086
          %v1150 = vadd.f32 %v1146, %v1087
          %v1151 = vadd.f32 %v1147, %v1088
          %v1152 = vadd.f32 %v1148, %v1089
          %v1153 = vadd.f32 %v1149, %v1090
          %v1154 = vadd.f32 %v1150, %v1091
          %v1155 = vadd.f32 %v1151, %v1092
          %v1156 = vadd.f32 %v1152, %v1093
          %v1157 = vadd.f32 %v1153, %v1094
          %v1158 = vadd.f32 %v1154, %v1095
          %v1159 = vadd.f32 %v1155, %v1096
          %v1160 = vadd.f32 %v1156, %v1097
          %v1161 = vadd.f32 %v1157, %v1098
          %v1162 = vadd.f32 %v1158, %v1099
          %v1163 = vadd.f32 %v1159, %v1100
          %v1164 = vadd.f32 %v1160, %v1101
          %v1165 = vadd.f32 %v1161, %v1102
          %v1166 = vadd.f32 %v1162, %v1103
          %v1167 = vadd.f32 %v1163, %v1104
          %v1168 = vadd.f32 %v1164, %v1105
          %v1169 = vadd.f32 %v1165, %v1106
          %v1170 = vadd.f32 %v1166, %v1107
          %v1171 = vadd.f32 %v1167, %v1108
          %v1172 = vadd.f32 %v1168, %v1109
          %v1173 = vadd.f32 %v1169, %v1110
          %v1174 = vadd.f32 %v1170, %v1111
          %v1175 = vadd.f32 %v1171, %v1112
          %v1176 = vadd.f32 %v1172, %v1113
          %v1177 = vadd.f32 %v1173, %v1114
          %v1178 = vadd.f32 %v1174, %v1115
          %v1179 = vadd.f32 %v1175, %v1116
          %v1180 = vadd.f32 %v1176, %v1117
          %v1181 = vadd.f32 %v1177, %v1118
          %v1182 = vadd.f32 %v1178, %v1119
          %v1183 = vadd.f32 %v1179, %v1120
          %v1184 = vadd.f32 %v1180, %v1121
          %v1185 = vadd.f32 %v1181, %v1122
          %v1186 = vadd.f32 %v1182, %v1123
          %v1187 = vld [vmem:[%s179] sm:$0xff]
          %v1188 = vld [vmem:[%s179 + $0x8] sm:$0xff]
          %v1189 = vld [vmem:[%s179 + $0x10] sm:$0xff]
          %v1190 = vld [vmem:[%s179 + $0x18] sm:$0xff]
          %v1191 = vadd.f32 %v1187, %v1183
          %v1192 = vadd.f32 %v1188, %v1184
          %v1193 = vadd.f32 %v1189, %v1185
          %v1194 = vadd.f32 %v1190, %v1186
          %1195 = vst [vmem:[%s179] sm:$0xff] %v1191
          %1196 = vst [vmem:[%s179 + $0x8] sm:$0xff] %v1192
          %1197 = vst [vmem:[%s179 + $0x10] sm:$0xff] %v1193
          %1198 = vst [vmem:[%s179 + $0x18] sm:$0xff] %v1194
        $region40: #{forward.3} parent=35 // pred_fallthru
          _
        %p1199 = scmp.le.s32.totalorder %s339, %s342
        // Predicated region
        $region41: #{forward.3} parent=35 // pred_check
          %p1200 = pneg %p1199
        $region42: #{forward.3} parent=35 // pred_check_branch
          %1202 = sbr.rel (%p1200) target = $region44
        $region43: #{forward.3} parent=35 // pred_region
          %v1203 = vld [vmem:[#allocation2] sm:$0xff]
          %v1204 = vld [vmem:[#allocation2 + $0x8] sm:$0xff]
          %v1205 = vld [vmem:[#allocation2 + $0x10] sm:$0xff]
          %v1206 = vld [vmem:[#allocation2 + $0x18] sm:$0xff]
          %v1207 = vld [vmem:[#allocation2 + $0x20] sm:$0xff]
          %v1208 = vld [vmem:[#allocation2 + $0x28] sm:$0xff]
          %v1209 = vld [vmem:[#allocation2 + $0x30] sm:$0xff]
          %v1210 = vld [vmem:[#allocation2 + $0x38] sm:$0xff]
          %v1211 = vld [vmem:[#allocation2 + $0x40] sm:$0xff]
          %v1212 = vld [vmem:[#allocation2 + $0x48] sm:$0xff]
          %v1213 = vld [vmem:[#allocation2 + $0x50] sm:$0xff]
          %v1214 = vld [vmem:[#allocation2 + $0x58] sm:$0xff]
          %v1215 = vld [vmem:[#allocation2 + $0x60] sm:$0xff]
          %v1216 = vld [vmem:[#allocation2 + $0x68] sm:$0xff]
          %v1217 = vld [vmem:[#allocation2 + $0x70] sm:$0xff]
          %v1218 = vld [vmem:[#allocation2 + $0x78] sm:$0xff]
          %v1219 = vld [vmem:[#allocation2 + $0x80] sm:$0xff]
          %v1220 = vld [vmem:[#allocation2 + $0x88] sm:$0xff]
          %v1221 = vld [vmem:[#allocation2 + $0x90] sm:$0xff]
          %v1222 = vld [vmem:[#allocation2 + $0x98] sm:$0xff]
          %v1223 = vld [vmem:[#allocation2 + $0xa0] sm:$0xff]
          %v1224 = vld [vmem:[#allocation2 + $0xa8] sm:$0xff]
          %v1225 = vld [vmem:[#allocation2 + $0xb0] sm:$0xff]
          %v1226 = vld [vmem:[#allocation2 + $0xb8] sm:$0xff]
          %v1227 = vld [vmem:[#allocation2 + $0xc0] sm:$0xff]
          %v1228 = vld [vmem:[#allocation2 + $0xc8] sm:$0xff]
          %v1229 = vld [vmem:[#allocation2 + $0xd0] sm:$0xff]
          %v1230 = vld [vmem:[#allocation2 + $0xd8] sm:$0xff]
          %v1231 = vld [vmem:[#allocation2 + $0xe0] sm:$0xff]
          %v1232 = vld [vmem:[#allocation2 + $0xe8] sm:$0xff]
          %v1233 = vld [vmem:[#allocation2 + $0xf0] sm:$0xff]
          %v1234 = vld [vmem:[#allocation2 + $0xf8] sm:$0xff]
          %v1235 = vld [vmem:[#allocation2 + $0x100] sm:$0xff]
          %v1236 = vld [vmem:[#allocation2 + $0x108] sm:$0xff]
          %v1237 = vld [vmem:[#allocation2 + $0x110] sm:$0xff]
          %v1238 = vld [vmem:[#allocation2 + $0x118] sm:$0xff]
          %v1239 = vld [vmem:[#allocation2 + $0x120] sm:$0xff]
          %v1240 = vld [vmem:[#allocation2 + $0x128] sm:$0xff]
          %v1241 = vld [vmem:[#allocation2 + $0x130] sm:$0xff]
          %v1242 = vld [vmem:[#allocation2 + $0x138] sm:$0xff]
          %v1243 = vld [vmem:[#allocation2 + $0x140] sm:$0xff]
          %v1244 = vld [vmem:[#allocation2 + $0x148] sm:$0xff]
          %v1245 = vld [vmem:[#allocation2 + $0x150] sm:$0xff]
          %v1246 = vld [vmem:[#allocation2 + $0x158] sm:$0xff]
          %v1247 = vld [vmem:[#allocation2 + $0x160] sm:$0xff]
          %v1248 = vld [vmem:[#allocation2 + $0x168] sm:$0xff]
          %v1249 = vld [vmem:[#allocation2 + $0x170] sm:$0xff]
          %v1250 = vld [vmem:[#allocation2 + $0x178] sm:$0xff]
          %v1251 = vld [vmem:[#allocation2 + $0x180] sm:$0xff]
          %v1252 = vld [vmem:[#allocation2 + $0x188] sm:$0xff]
          %v1253 = vld [vmem:[#allocation2 + $0x190] sm:$0xff]
          %v1254 = vld [vmem:[#allocation2 + $0x198] sm:$0xff]
          %v1255 = vld [vmem:[#allocation2 + $0x1a0] sm:$0xff]
          %v1256 = vld [vmem:[#allocation2 + $0x1a8] sm:$0xff]
          %v1257 = vld [vmem:[#allocation2 + $0x1b0] sm:$0xff]
          %v1258 = vld [vmem:[#allocation2 + $0x1b8] sm:$0xff]
          %v1259 = vld [vmem:[#allocation2 + $0x1c0] sm:$0xff]
          %v1260 = vld [vmem:[#allocation2 + $0x1c8] sm:$0xff]
          %v1261 = vld [vmem:[#allocation2 + $0x1d0] sm:$0xff]
          %v1262 = vld [vmem:[#allocation2 + $0x1d8] sm:$0xff]
          %v1263 = vld [vmem:[#allocation2 + $0x1e0] sm:$0xff]
          %v1264 = vld [vmem:[#allocation2 + $0x1e8] sm:$0xff]
          %v1265 = vld [vmem:[#allocation2 + $0x1f0] sm:$0xff]
          %v1266 = vld [vmem:[#allocation2 + $0x1f8] sm:$0xff]
          %s1267 = ssub.s32 %s338, %s339
          %v1268 = vstv %s1267
          %vm1269 = vcmp.gt.s32.totalorder %v1203, %v1268
          %vm1270 = vcmp.gt.s32.totalorder %v1204, %v1268
          %vm1271 = vcmp.gt.s32.totalorder %v1205, %v1268
          %vm1272 = vcmp.gt.s32.totalorder %v1206, %v1268
          %vm1273 = vcmp.gt.s32.totalorder %v1207, %v1268
          %vm1274 = vcmp.gt.s32.totalorder %v1208, %v1268
          %vm1275 = vcmp.gt.s32.totalorder %v1209, %v1268
          %vm1276 = vcmp.gt.s32.totalorder %v1210, %v1268
          %vm1277 = vcmp.gt.s32.totalorder %v1211, %v1268
          %vm1278 = vcmp.gt.s32.totalorder %v1212, %v1268
          %vm1279 = vcmp.gt.s32.totalorder %v1213, %v1268
          %vm1280 = vcmp.gt.s32.totalorder %v1214, %v1268
          %vm1281 = vcmp.gt.s32.totalorder %v1215, %v1268
          %vm1282 = vcmp.gt.s32.totalorder %v1216, %v1268
          %vm1283 = vcmp.gt.s32.totalorder %v1217, %v1268
          %vm1284 = vcmp.gt.s32.totalorder %v1218, %v1268
          %vm1285 = vcmp.gt.s32.totalorder %v1219, %v1268
          %vm1286 = vcmp.gt.s32.totalorder %v1220, %v1268
          %vm1287 = vcmp.gt.s32.totalorder %v1221, %v1268
          %vm1288 = vcmp.gt.s32.totalorder %v1222, %v1268
          %vm1289 = vcmp.gt.s32.totalorder %v1223, %v1268
          %vm1290 = vcmp.gt.s32.totalorder %v1224, %v1268
          %vm1291 = vcmp.gt.s32.totalorder %v1225, %v1268
          %vm1292 = vcmp.gt.s32.totalorder %v1226, %v1268
          %vm1293 = vcmp.gt.s32.totalorder %v1227, %v1268
          %vm1294 = vcmp.gt.s32.totalorder %v1228, %v1268
          %vm1295 = vcmp.gt.s32.totalorder %v1229, %v1268
          %vm1296 = vcmp.gt.s32.totalorder %v1230, %v1268
          %vm1297 = vcmp.gt.s32.totalorder %v1231, %v1268
          %vm1298 = vcmp.gt.s32.totalorder %v1232, %v1268
          %vm1299 = vcmp.gt.s32.totalorder %v1233, %v1268
          %vm1300 = vcmp.gt.s32.totalorder %v1234, %v1268
          %vm1301 = vcmp.gt.s32.totalorder %v1235, %v1268
          %vm1302 = vcmp.gt.s32.totalorder %v1236, %v1268
          %vm1303 = vcmp.gt.s32.totalorder %v1237, %v1268
          %vm1304 = vcmp.gt.s32.totalorder %v1238, %v1268
          %vm1305 = vcmp.gt.s32.totalorder %v1239, %v1268
          %vm1306 = vcmp.gt.s32.totalorder %v1240, %v1268
          %vm1307 = vcmp.gt.s32.totalorder %v1241, %v1268
          %vm1308 = vcmp.gt.s32.totalorder %v1242, %v1268
          %vm1309 = vcmp.gt.s32.totalorder %v1243, %v1268
          %vm1310 = vcmp.gt.s32.totalorder %v1244, %v1268
          %vm1311 = vcmp.gt.s32.totalorder %v1245, %v1268
          %vm1312 = vcmp.gt.s32.totalorder %v1246, %v1268
          %vm1313 = vcmp.gt.s32.totalorder %v1247, %v1268
          %vm1314 = vcmp.gt.s32.totalorder %v1248, %v1268
          %vm1315 = vcmp.gt.s32.totalorder %v1249, %v1268
          %vm1316 = vcmp.gt.s32.totalorder %v1250, %v1268
          %vm1317 = vcmp.gt.s32.totalorder %v1251, %v1268
          %vm1318 = vcmp.gt.s32.totalorder %v1252, %v1268
          %vm1319 = vcmp.gt.s32.totalorder %v1253, %v1268
          %vm1320 = vcmp.gt.s32.totalorder %v1254, %v1268
          %vm1321 = vcmp.gt.s32.totalorder %v1255, %v1268
          %vm1322 = vcmp.gt.s32.totalorder %v1256, %v1268
          %vm1323 = vcmp.gt.s32.totalorder %v1257, %v1268
          %vm1324 = vcmp.gt.s32.totalorder %v1258, %v1268
          %vm1325 = vcmp.gt.s32.totalorder %v1259, %v1268
          %vm1326 = vcmp.gt.s32.totalorder %v1260, %v1268
          %vm1327 = vcmp.gt.s32.totalorder %v1261, %v1268
          %vm1328 = vcmp.gt.s32.totalorder %v1262, %v1268
          %vm1329 = vcmp.gt.s32.totalorder %v1263, %v1268
          %vm1330 = vcmp.gt.s32.totalorder %v1264, %v1268
          %vm1331 = vcmp.gt.s32.totalorder %v1265, %v1268
          %vm1332 = vcmp.gt.s32.totalorder %v1266, %v1268
          %v1333 = vsel %vm1269, 1, 0
          %v1334 = vsel %vm1270, 1, 0
          %v1335 = vsel %vm1271, 1, 0
          %v1336 = vsel %vm1272, 1, 0
          %v1337 = vsel %vm1273, 1, 0
          %v1338 = vsel %vm1274, 1, 0
          %v1339 = vsel %vm1275, 1, 0
          %v1340 = vsel %vm1276, 1, 0
          %v1341 = vsel %vm1277, 1, 0
          %v1342 = vsel %vm1278, 1, 0
          %v1343 = vsel %vm1279, 1, 0
          %v1344 = vsel %vm1280, 1, 0
          %v1345 = vsel %vm1281, 1, 0
          %v1346 = vsel %vm1282, 1, 0
          %v1347 = vsel %vm1283, 1, 0
          %v1348 = vsel %vm1284, 1, 0
          %v1349 = vsel %vm1285, 1, 0
          %v1350 = vsel %vm1286, 1, 0
          %v1351 = vsel %vm1287, 1, 0
          %v1352 = vsel %vm1288, 1, 0
          %v1353 = vsel %vm1289, 1, 0
          %v1354 = vsel %vm1290, 1, 0
          %v1355 = vsel %vm1291, 1, 0
          %v1356 = vsel %vm1292, 1, 0
          %v1357 = vsel %vm1293, 1, 0
          %v1358 = vsel %vm1294, 1, 0
          %v1359 = vsel %vm1295, 1, 0
          %v1360 = vsel %vm1296, 1, 0
          %v1361 = vsel %vm1297, 1, 0
          %v1362 = vsel %vm1298, 1, 0
          %v1363 = vsel %vm1299, 1, 0
          %v1364 = vsel %vm1300, 1, 0
          %v1365 = vsel %vm1301, 1, 0
          %v1366 = vsel %vm1302, 1, 0
          %v1367 = vsel %vm1303, 1, 0
          %v1368 = vsel %vm1304, 1, 0
          %v1369 = vsel %vm1305, 1, 0
          %v1370 = vsel %vm1306, 1, 0
          %v1371 = vsel %vm1307, 1, 0
          %v1372 = vsel %vm1308, 1, 0
          %v1373 = vsel %vm1309, 1, 0
          %v1374 = vsel %vm1310, 1, 0
          %v1375 = vsel %vm1311, 1, 0
          %v1376 = vsel %vm1312, 1, 0
          %v1377 = vsel %vm1313, 1, 0
          %v1378 = vsel %vm1314, 1, 0
          %v1379 = vsel %vm1315, 1, 0
          %v1380 = vsel %vm1316, 1, 0
          %v1381 = vsel %vm1317, 1, 0
          %v1382 = vsel %vm1318, 1, 0
          %v1383 = vsel %vm1319, 1, 0
          %v1384 = vsel %vm1320, 1, 0
          %v1385 = vsel %vm1321, 1, 0
          %v1386 = vsel %vm1322, 1, 0
          %v1387 = vsel %vm1323, 1, 0
          %v1388 = vsel %vm1324, 1, 0
          %v1389 = vsel %vm1325, 1, 0
          %v1390 = vsel %vm1326, 1, 0
          %v1391 = vsel %vm1327, 1, 0
          %v1392 = vsel %vm1328, 1, 0
          %v1393 = vsel %vm1329, 1, 0
          %v1394 = vsel %vm1330, 1, 0
          %v1395 = vsel %vm1331, 1, 0
          %v1396 = vsel %vm1332, 1, 0
          %v1397 = vcvt.s32.f32 %v1333
          %v1398 = vcvt.s32.f32 %v1334
          %v1399 = vcvt.s32.f32 %v1335
          %v1400 = vcvt.s32.f32 %v1336
          %v1401 = vcvt.s32.f32 %v1337
          %v1402 = vcvt.s32.f32 %v1338
          %v1403 = vcvt.s32.f32 %v1339
          %v1404 = vcvt.s32.f32 %v1340
          %v1405 = vcvt.s32.f32 %v1341
          %v1406 = vcvt.s32.f32 %v1342
          %v1407 = vcvt.s32.f32 %v1343
          %v1408 = vcvt.s32.f32 %v1344
          %v1409 = vcvt.s32.f32 %v1345
          %v1410 = vcvt.s32.f32 %v1346
          %v1411 = vcvt.s32.f32 %v1347
          %v1412 = vcvt.s32.f32 %v1348
          %v1413 = vcvt.s32.f32 %v1349
          %v1414 = vcvt.s32.f32 %v1350
          %v1415 = vcvt.s32.f32 %v1351
          %v1416 = vcvt.s32.f32 %v1352
          %v1417 = vcvt.s32.f32 %v1353
          %v1418 = vcvt.s32.f32 %v1354
          %v1419 = vcvt.s32.f32 %v1355
          %v1420 = vcvt.s32.f32 %v1356
          %v1421 = vcvt.s32.f32 %v1357
          %v1422 = vcvt.s32.f32 %v1358
          %v1423 = vcvt.s32.f32 %v1359
          %v1424 = vcvt.s32.f32 %v1360
          %v1425 = vcvt.s32.f32 %v1361
          %v1426 = vcvt.s32.f32 %v1362
          %v1427 = vcvt.s32.f32 %v1363
          %v1428 = vcvt.s32.f32 %v1364
          %v1429 = vcvt.s32.f32 %v1365
          %v1430 = vcvt.s32.f32 %v1366
          %v1431 = vcvt.s32.f32 %v1367
          %v1432 = vcvt.s32.f32 %v1368
          %v1433 = vcvt.s32.f32 %v1369
          %v1434 = vcvt.s32.f32 %v1370
          %v1435 = vcvt.s32.f32 %v1371
          %v1436 = vcvt.s32.f32 %v1372
          %v1437 = vcvt.s32.f32 %v1373
          %v1438 = vcvt.s32.f32 %v1374
          %v1439 = vcvt.s32.f32 %v1375
          %v1440 = vcvt.s32.f32 %v1376
          %v1441 = vcvt.s32.f32 %v1377
          %v1442 = vcvt.s32.f32 %v1378
          %v1443 = vcvt.s32.f32 %v1379
          %v1444 = vcvt.s32.f32 %v1380
          %v1445 = vcvt.s32.f32 %v1381
          %v1446 = vcvt.s32.f32 %v1382
          %v1447 = vcvt.s32.f32 %v1383
          %v1448 = vcvt.s32.f32 %v1384
          %v1449 = vcvt.s32.f32 %v1385
          %v1450 = vcvt.s32.f32 %v1386
          %v1451 = vcvt.s32.f32 %v1387
          %v1452 = vcvt.s32.f32 %v1388
          %v1453 = vcvt.s32.f32 %v1389
          %v1454 = vcvt.s32.f32 %v1390
          %v1455 = vcvt.s32.f32 %v1391
          %v1456 = vcvt.s32.f32 %v1392
          %v1457 = vcvt.s32.f32 %v1393
          %v1458 = vcvt.s32.f32 %v1394
          %v1459 = vcvt.s32.f32 %v1395
          %v1460 = vcvt.s32.f32 %v1396
          %v1461 = vmul.f32 %v1060, %v1397
          %v1462 = vmul.f32 %v1061, %v1398
          %v1463 = vmul.f32 %v1062, %v1399
          %v1464 = vmul.f32 %v1063, %v1400
          %v1465 = vmul.f32 %v1064, %v1401
          %v1466 = vmul.f32 %v1065, %v1402
          %v1467 = vmul.f32 %v1066, %v1403
          %v1468 = vmul.f32 %v1067, %v1404
          %v1469 = vmul.f32 %v1068, %v1405
          %v1470 = vmul.f32 %v1069, %v1406
          %v1471 = vmul.f32 %v1070, %v1407
          %v1472 = vmul.f32 %v1071, %v1408
          %v1473 = vmul.f32 %v1072, %v1409
          %v1474 = vmul.f32 %v1073, %v1410
          %v1475 = vmul.f32 %v1074, %v1411
          %v1476 = vmul.f32 %v1075, %v1412
          %v1477 = vmul.f32 %v1076, %v1413
          %v1478 = vmul.f32 %v1077, %v1414
          %v1479 = vmul.f32 %v1078, %v1415
          %v1480 = vmul.f32 %v1079, %v1416
          %v1481 = vmul.f32 %v1080, %v1417
          %v1482 = vmul.f32 %v1081, %v1418
          %v1483 = vmul.f32 %v1082, %v1419
          %v1484 = vmul.f32 %v1083, %v1420
          %v1485 = vmul.f32 %v1084, %v1421
          %v1486 = vmul.f32 %v1085, %v1422
          %v1487 = vmul.f32 %v1086, %v1423
          %v1488 = vmul.f32 %v1087, %v1424
          %v1489 = vmul.f32 %v1088, %v1425
          %v1490 = vmul.f32 %v1089, %v1426
          %v1491 = vmul.f32 %v1090, %v1427
          %v1492 = vmul.f32 %v1091, %v1428
          %v1493 = vmul.f32 %v1092, %v1429
          %v1494 = vmul.f32 %v1093, %v1430
          %v1495 = vmul.f32 %v1094, %v1431
          %v1496 = vmul.f32 %v1095, %v1432
          %v1497 = vmul.f32 %v1096, %v1433
          %v1498 = vmul.f32 %v1097, %v1434
          %v1499 = vmul.f32 %v1098, %v1435
          %v1500 = vmul.f32 %v1099, %v1436
          %v1501 = vmul.f32 %v1100, %v1437
          %v1502 = vmul.f32 %v1101, %v1438
          %v1503 = vmul.f32 %v1102, %v1439
          %v1504 = vmul.f32 %v1103, %v1440
          %v1505 = vmul.f32 %v1104, %v1441
          %v1506 = vmul.f32 %v1105, %v1442
          %v1507 = vmul.f32 %v1106, %v1443
          %v1508 = vmul.f32 %v1107, %v1444
          %v1509 = vmul.f32 %v1108, %v1445
          %v1510 = vmul.f32 %v1109, %v1446
          %v1511 = vmul.f32 %v1110, %v1447
          %v1512 = vmul.f32 %v1111, %v1448
          %v1513 = vmul.f32 %v1112, %v1449
          %v1514 = vmul.f32 %v1113, %v1450
          %v1515 = vmul.f32 %v1114, %v1451
          %v1516 = vmul.f32 %v1115, %v1452
          %v1517 = vmul.f32 %v1116, %v1453
          %v1518 = vmul.f32 %v1117, %v1454
          %v1519 = vmul.f32 %v1118, %v1455
          %v1520 = vmul.f32 %v1119, %v1456
          %v1521 = vmul.f32 %v1120, %v1457
          %v1522 = vmul.f32 %v1121, %v1458
          %v1523 = vmul.f32 %v1122, %v1459
          %v1524 = vmul.f32 %v1123, %v1460
          %v1525 = vadd.f32 %v1461, %v1465
          %v1526 = vadd.f32 %v1462, %v1466
          %v1527 = vadd.f32 %v1463, %v1467
          %v1528 = vadd.f32 %v1464, %v1468
          %v1529 = vadd.f32 %v1525, %v1469
          %v1530 = vadd.f32 %v1526, %v1470
          %v1531 = vadd.f32 %v1527, %v1471
          %v1532 = vadd.f32 %v1528, %v1472
          %v1533 = vadd.f32 %v1529, %v1473
          %v1534 = vadd.f32 %v1530, %v1474
          %v1535 = vadd.f32 %v1531, %v1475
          %v1536 = vadd.f32 %v1532, %v1476
          %v1537 = vadd.f32 %v1533, %v1477
          %v1538 = vadd.f32 %v1534, %v1478
          %v1539 = vadd.f32 %v1535, %v1479
          %v1540 = vadd.f32 %v1536, %v1480
          %v1541 = vadd.f32 %v1537, %v1481
          %v1542 = vadd.f32 %v1538, %v1482
          %v1543 = vadd.f32 %v1539, %v1483
          %v1544 = vadd.f32 %v1540, %v1484
          %v1545 = vadd.f32 %v1541, %v1485
          %v1546 = vadd.f32 %v1542, %v1486
          %v1547 = vadd.f32 %v1543, %v1487
          %v1548 = vadd.f32 %v1544, %v1488
          %v1549 = vadd.f32 %v1545, %v1489
          %v1550 = vadd.f32 %v1546, %v1490
          %v1551 = vadd.f32 %v1547, %v1491
          %v1552 = vadd.f32 %v1548, %v1492
          %v1553 = vadd.f32 %v1549, %v1493
          %v1554 = vadd.f32 %v1550, %v1494
          %v1555 = vadd.f32 %v1551, %v1495
          %v1556 = vadd.f32 %v1552, %v1496
          %v1557 = vadd.f32 %v1553, %v1497
          %v1558 = vadd.f32 %v1554, %v1498
          %v1559 = vadd.f32 %v1555, %v1499
          %v1560 = vadd.f32 %v1556, %v1500
          %v1561 = vadd.f32 %v1557, %v1501
          %v1562 = vadd.f32 %v1558, %v1502
          %v1563 = vadd.f32 %v1559, %v1503
          %v1564 = vadd.f32 %v1560, %v1504
          %v1565 = vadd.f32 %v1561, %v1505
          %v1566 = vadd.f32 %v1562, %v1506
          %v1567 = vadd.f32 %v1563, %v1507
          %v1568 = vadd.f32 %v1564, %v1508
          %v1569 = vadd.f32 %v1565, %v1509
          %v1570 = vadd.f32 %v1566, %v1510
          %v1571 = vadd.f32 %v1567, %v1511
          %v1572 = vadd.f32 %v1568, %v1512
          %v1573 = vadd.f32 %v1569, %v1513
          %v1574 = vadd.f32 %v1570, %v1514
          %v1575 = vadd.f32 %v1571, %v1515
          %v1576 = vadd.f32 %v1572, %v1516
          %v1577 = vadd.f32 %v1573, %v1517
          %v1578 = vadd.f32 %v1574, %v1518
          %v1579 = vadd.f32 %v1575, %v1519
          %v1580 = vadd.f32 %v1576, %v1520
          %v1581 = vadd.f32 %v1577, %v1521
          %v1582 = vadd.f32 %v1578, %v1522
          %v1583 = vadd.f32 %v1579, %v1523
          %v1584 = vadd.f32 %v1580, %v1524
          %v1585 = vld [vmem:[%s179] sm:$0xff]
          %v1586 = vld [vmem:[%s179 + $0x8] sm:$0xff]
          %v1587 = vld [vmem:[%s179 + $0x10] sm:$0xff]
          %v1588 = vld [vmem:[%s179 + $0x18] sm:$0xff]
          %v1589 = vadd.f32 %v1585, %v1581
          %v1590 = vadd.f32 %v1586, %v1582
          %v1591 = vadd.f32 %v1587, %v1583
          %v1592 = vadd.f32 %v1588, %v1584
          %1593 = vst [vmem:[%s179] sm:$0xff] %v1589
          %1594 = vst [vmem:[%s179 + $0x8] sm:$0xff] %v1590
          %1595 = vst [vmem:[%s179 + $0x10] sm:$0xff] %v1591
          %1596 = vst [vmem:[%s179 + $0x18] sm:$0xff] %v1592
        $region44: #{forward.3} parent=35 // pred_fallthru
          _
      $region36: #{forward.3} parent=27 // pred_fallthru
        _
      %p1597 = scmp.lt.s32.totalorder %s17, 3
      %s1598 = scalar_select %p1597, %s17, 3
      %s1599 = smul.addr %s1598, 4
      %s1600 = smul.addr %s1599, 8
      %s1601 = scalar_lea.vmem %s2, %s1600
      // Predicated region
      $region45: #{forward.3} parent=27 // pred_check
        %p1602 = pneg %p95
      $region46: #{forward.3} parent=27 // pred_check_branch
        %1604 = sbr.rel (%p1602) target = $region48
      $region47: #{forward.3} parent=27 // pred_region
        _
      $region48: #{forward.3} parent=27 // pred_fallthru
        _
    $region28: #{forward.3} parent=5 // pred_fallthru
      _
    %p1605 = scmp.le.s32.totalorder 2, %s8
    // Predicated region
    $region49: #{forward.3} parent=5 // pred_check
      %p1606 = pneg %p1605
    $region50: #{forward.3} parent=5 // pred_check_branch
      %1608 = sbr.rel (%p1606) target = $region52
    $region51: #{forward.3} parent=5 // pred_region
      %s1609 = ssub.s32 %s8, 2
      // Predicated region
      $region53: #{forward.3} parent=51 // pred_check
        %p1610 = pneg %p101
      $region54: #{forward.3} parent=51 // pred_check_branch
        %1612 = sbr.rel (%p1610) target = $region56
      $region55: #{forward.3} parent=51 // pred_region
        %p1613 = scmp.lt.s32.totalorder %s19, 3
        %s1614 = scalar_select %p1613, %s19, 3
        %s1615 = smul.addr %s1614, 4
        %s1616 = smul.addr %s1615, 8
        %s1617 = scalar_lea.vmem %s2, %s1616
      $region56: #{forward.3} parent=51 // pred_fallthru
        _
    $region52: #{forward.3} parent=5 // pred_fallthru
      _
  $region6: #{forward.3} parent=0 // loop_footer
    %s12 = sadd.s32 1, %s8
  $region7: #{forward.3} parent=0 // loop_footer_branch
    %7 = sbr.rel target = $region3
  $region8: #{forward.3} parent=0 // loop_exit
    _

</llo_original>
